<compile_context>
chip_gen: v6e
topology: v6e:2x2x1
jax: 0.10.0
libtpu: 0.0.40
codegen_flags: <defaults>
</compile_context>

<pallas_src>
import math

import jax
import jax.numpy as jnp
from jax.experimental import pallas as pl
from jax.experimental.pallas import tpu as pltpu


_VMEM = pl.BlockSpec(memory_space=pltpu.MemorySpace.VMEM)


# --------------------------------------------------------------------------------------
# Fused Pallas kernel: conv1 -> ReLU -> conv2 -> mean-pool
# --------------------------------------------------------------------------------------
def _make_fused_kernel(heads: int, head_dim: int, dot_dtype=jnp.float32):
    hd = heads * head_dim
    scale = 1.0 / math.sqrt(head_dim)     # Python float -> jaxpr literal (no captured const)
    inv_heads = 1.0 / heads
    neg_big = -1e30                        # mask fill value, safe in f32

    def conv_layer(x, mask, w_ref, b_ref, apply_relu):
        # One packed lane-dense projection:
        #   x @ [h0:(Wq|Wk|Wv) | h1:(Wq|Wk|Wv) | ... | Wskip] -> (N, 3*heads*D + D)
        proj = jnp.dot(x.astype(dot_dtype), w_ref[...].astype(dot_dtype),
                       preferred_element_type=jnp.float32) + b_ref[...]
        skip = proj[:, 3 * hd:3 * hd + head_dim]                        # (N, D)

        acc = None
        for h in range(heads):             # static unroll; every op stays 2-D
            base = h * 3 * head_dim        # head-major packing -> contiguous lanes per head
            q = proj[:, base:base + head_dim]
            k = proj[:, base + head_dim:base + 2 * head_dim]
            v = proj[:, base + 2 * head_dim:base + 3 * head_dim]

            s = jnp.dot(q.astype(dot_dtype), k.astype(dot_dtype).T,
                        preferred_element_type=jnp.float32) * scale     # (N, N)
            s = jnp.where(mask, s, neg_big)
            m = jnp.max(s, axis=-1, keepdims=True)                      # (N, 1)
            p = jnp.exp(s - m)             # masked entries underflow to 0 when a row has edges
            denom = jnp.sum(p, axis=-1, keepdims=True)                  # >= 1 when row has edges
            attn = p * pl.reciprocal(denom, approx=True)                # divide on EUP, not VALU
            pv = jnp.dot(attn.astype(dot_dtype), v.astype(dot_dtype),
                         preferred_element_type=jnp.float32)            # (N, D)
            # Rows with no in-edges: m stayed at -1e30 -> zero attention term (PyG empty softmax).
            pv = jnp.where(m > -1e29, pv, 0.0)
            acc = pv if acc is None else acc + pv

        out = acc * inv_heads + skip       # concat=False -> mean over heads; + root/skip term
        if apply_relu:
            out = jnp.maximum(out, 0.0)
        return out

    def kernel(x_ref, adj_ref, pool_ref, w1_ref, b1_ref, w2_ref, b2_ref, out_ref):
        mask = adj_ref[...] != 0           # int8 adjacency used directly, no f32 cast
        h1 = conv_layer(x_ref[...], mask, w1_ref, b1_ref, True)
        h2 = conv_layer(h1, mask, w2_ref, b2_ref, False)
        # global_mean_pool fused in (h1/h2 never touch HBM). Final Linear is done in XLA so the
        # kernel's output stores stay hidden-lanes wide instead of num_classes(=3) wide.
        out_ref[...] = jnp.dot(pool_ref[...], h2, preferred_element_type=jnp.float32)

    return kernel


# --------------------------------------------------------------------------------------
# Wrapper
# --------------------------------------------------------------------------------------
def _pack_conv_params(p, heads, head_dim):
    # Head-major packing: [h0:(Wq|Wk|Wv)][h1:(Wq|Wk|Wv)]...[Wskip], so each head's q/k/v sit in
    # one contiguous lane block of the packed projection (no jnp.stack / scattered slices).
    cols_w, cols_b = [], []
    for h in range(heads):
        sl = slice(h * head_dim, (h + 1) * head_dim)
        cols_w += [p["wq"][:, sl], p["wk"][:, sl], p["wv"][:, sl]]
        cols_b += [p["bq"][:, sl], p["bk"][:, sl], p["bv"][:, sl]]
    w = jnp.concatenate(cols_w + [p["ws"]], axis=1)
    b = jnp.concatenate(cols_b + [p["bs"]], axis=1)
    return w, b


def graph_transformer_forward(x, edge_index, batch, params, *, heads, hidden,
                              num_graphs, dot_dtype=jnp.float32):
    n, in_ch = x.shape
    num_classes = params["lin_w"].shape[1]

    # Glue (plain XLA): dense int8 adjacency (adj[dst, src] = 1; duplicate edges collapse) and
    # the per-graph mean-pool matrix.
    adj = jnp.zeros((n, n), jnp.int8).at[edge_index[1], edge_index[0]].set(1)
    one_hot = (batch[None, :] == jnp.arange(num_graphs)[:, None]).astype(jnp.float32)
    pool_mat = one_hot / jnp.maximum(one_hot.sum(axis=1, keepdims=True), 1.0)

    w1, b1 = _pack_conv_params(params["conv1"], heads, hidden)
    w2, b2 = _pack_conv_params(params["conv2"], heads, hidden)

    # Advisory cost estimate so XLA schedules the fused call sensibly inside a larger graph.
    hd = heads * hidden
    proj_cols = 3 * hd + hidden
    flops = 2 * num_graphs * n * hidden
    for cin in (in_ch, hidden):
        flops += 2 * n * cin * proj_cols + 4 * heads * n * n * hidden
    transcendentals = 2 * (heads * n * n + heads * n)
    bytes_accessed = int(x.size * 4 + n * n + pool_mat.size * 4
                         + (w1.size + b1.size + w2.size + b2.size) * 4
                         + num_graphs * hidden * 4)

    kernel = _make_fused_kernel(heads, hidden, dot_dtype)
    pooled = pl.pallas_call(
        kernel,
        out_shape=jax.ShapeDtypeStruct((num_graphs, hidden), jnp.float32),
        in_specs=[_VMEM] * 7,
        out_specs=_VMEM,
        compiler_params=pltpu.CompilerParams(vmem_limit_bytes=32 * 1024 * 1024),
        cost_estimate=pl.CostEstimate(flops=flops, transcendentals=transcendentals,
                                      bytes_accessed=bytes_accessed),
    )(x, adj, pool_mat, w1, b1, w2, b2)

    # Tiny final Linear in XLA: (num_graphs, hidden) @ (hidden, num_classes).
    return (pooled @ params["lin_w"] + params["lin_b"]).reshape(num_graphs, num_classes)


# --------------------------------------------------------------------------------------
# Pure-JAX reference (same math, exact division) for a silent sanity check
# --------------------------------------------------------------------------------------
def _conv_ref(x, adj, p, heads, head_dim, apply_relu):
    q = x @ p["wq"] + p["bq"]
    k = x @ p["wk"] + p["bk"]
    v = x @ p["wv"] + p["bv"]
    n = x.shape[0]
    acc = jnp.zeros((n, head_dim), jnp.float32)
    scale = 1.0 / math.sqrt(head_dim)
    for h in range(heads):
        qs = q[:, h * head_dim:(h + 1) * head_dim]
        ks = k[:, h * head_dim:(h + 1) * head_dim]
        vs = v[:, h * head_dim:(h + 1) * head_dim]
        s = (qs @ ks.T) * scale
        masked = jnp.where(adj > 0, s, -1e30)
        m = jnp.max(masked, axis=-1, keepdims=True)
        pmat = jnp.exp(masked - m) * adj
        den = jnp.sum(pmat, axis=-1, keepdims=True)
        attn = jnp.where(den > 0, pmat / jnp.maximum(den, 1e-30), 0.0)
        acc = acc + attn @ vs
    out = acc / heads + x @ p["ws"] + p["bs"]
    return jnp.maximum(out, 0.0) if apply_relu else out


def _forward_ref(x, edge_index, batch, params, heads, hidden, num_graphs):
    n = x.shape[0]
    adj = jnp.zeros((n, n), jnp.float32).at[edge_index[1], edge_index[0]].set(1.0)
    one_hot = (batch[None, :] == jnp.arange(num_graphs)[:, None]).astype(jnp.float32)
    pool_mat = one_hot / jnp.maximum(one_hot.sum(axis=1, keepdims=True), 1.0)
    h1 = _conv_ref(x, adj, params["conv1"], heads, hidden, True)
    h2 = _conv_ref(h1, adj, params["conv2"], heads, hidden, False)
    return (pool_mat @ h2) @ params["lin_w"] + params["lin_b"]


# --------------------------------------------------------------------------------------
# Deterministic parameter init
# --------------------------------------------------------------------------------------
def _init_conv_params(key, in_ch, hidden, heads):
    ks = jax.random.split(key, 8)
    hd = heads * hidden
    return {
        "wq": 0.1 * jax.random.normal(ks[0], (in_ch, hd), jnp.float32),
        "bq": 0.1 * jax.random.normal(ks[1], (1, hd), jnp.float32),
        "wk": 0.1 * jax.random.normal(ks[2], (in_ch, hd), jnp.float32),
        "bk": 0.1 * jax.random.normal(ks[3], (1, hd), jnp.float32),
        "wv": 0.1 * jax.random.normal(ks[4], (in_ch, hd), jnp.float32),
        "bv": 0.1 * jax.random.normal(ks[5], (1, hd), jnp.float32),
        "ws": 0.1 * jax.random.normal(ks[6], (in_ch, hidden), jnp.float32),
        "bs": 0.1 * jax.random.normal(ks[7], (1, hidden), jnp.float32),
    }


def init_params(key, in_ch, hidden, num_classes, heads):
    k1, k2, k3, k4 = jax.random.split(key, 4)
    return {
        "conv1": _init_conv_params(k1, in_ch, hidden, heads),
        "conv2": _init_conv_params(k2, hidden, hidden, heads),
        "lin_w": 0.1 * jax.random.normal(k3, (hidden, num_classes), jnp.float32),
        "lin_b": 0.1 * jax.random.normal(k4, (1, num_classes), jnp.float32),
    }


# --------------------------------------------------------------------------------------
# Main
# --------------------------------------------------------------------------------------
if __name__ == "__main__":
    IN_CH, HIDDEN, NUM_CLASSES, HEADS = 8, 16, 3, 4
    NODES_PER_GRAPH, NUM_GRAPHS = 8, 2
    N = NODES_PER_GRAPH * NUM_GRAPHS

    key = jax.random.PRNGKey(0)
    kx, kp = jax.random.split(key)
    x = jax.random.normal(kx, (N, IN_CH), jnp.float32)

    # Two disjoint ring graphs (bidirectional edges), PyG edge_index convention (2, E).
    srcs, dsts = [], []
    for g in range(NUM_GRAPHS):
        base = g * NODES_PER_GRAPH
        for i in range(NODES_PER_GRAPH):
            j = (i + 1) % NODES_PER_GRAPH
            srcs += [base + i, base + j]
            dsts += [base + j, base + i]
    edge_index = jnp.array([srcs, dsts], dtype=jnp.int32)
    batch = jnp.repeat(jnp.arange(NUM_GRAPHS, dtype=jnp.int32), NODES_PER_GRAPH)

    params = init_params(kp, IN_CH, HIDDEN, NUM_CLASSES, HEADS)

    out = graph_transformer_forward(x, edge_index, batch, params,
                                    heads=HEADS, hidden=HIDDEN, num_graphs=NUM_GRAPHS)
    out = jax.block_until_ready(out)

    ref = _forward_ref(x, edge_index, batch, params, HEADS, HIDDEN, NUM_GRAPHS)
    assert out.shape == (NUM_GRAPHS, NUM_CLASSES)
    # Tolerance allows the approx-reciprocal (EUP) softmax divide (~2^-12 relative, 2 layers).
    assert bool(jnp.allclose(out, ref, atol=2e-3, rtol=2e-3))

    print("KERNEL_OK")
</pallas_src>

<mosaic_0001>
module attributes {stable_mosaic.version = 11 : i64} {
  func.func @kernel(%arg0: memref<16x8xf32, #tpu.memory_space<vmem>>, %arg1: memref<16x16xi8, #tpu.memory_space<vmem>>, %arg2: memref<2x16xf32, #tpu.memory_space<vmem>>, %arg3: memref<8x208xf32, #tpu.memory_space<vmem>>, %arg4: memref<1x208xf32, #tpu.memory_space<vmem>>, %arg5: memref<16x208xf32, #tpu.memory_space<vmem>>, %arg6: memref<1x208xf32, #tpu.memory_space<vmem>>, %arg7: memref<2x16xf32, #tpu.memory_space<vmem>>) attributes {dimension_semantics = [], scalar_prefetch = 0 : i64, scratch_operands = 0 : i64, tpu.core_type = #tpu.core_type<tc>} {
    %c0 = arith.constant 0 : index
    %c0_0 = arith.constant 0 : index
    %0 = vector.load %arg1[%c0, %c0_0] : memref<16x16xi8, #tpu.memory_space<vmem>>, vector<16x16xi8>
    %c0_i8 = arith.constant 0 : i8
    %1 = vector.broadcast %c0_i8 : i8 to vector<16x16xi8>
    %2 = arith.cmpi ne, %0, %1 : vector<16x16xi8>
    %c0_1 = arith.constant 0 : index
    %c0_2 = arith.constant 0 : index
    %3 = vector.load %arg0[%c0_1, %c0_2] : memref<16x8xf32, #tpu.memory_space<vmem>>, vector<16x8xf32>
    %c0_3 = arith.constant 0 : index
    %c0_4 = arith.constant 0 : index
    %4 = vector.load %arg3[%c0_3, %c0_4] : memref<8x208xf32, #tpu.memory_space<vmem>>, vector<8x208xf32>
    %cst = arith.constant dense<0.000000e+00> : vector<16x208xf32>
    %5 = tpu.matmul %3, %4, %cst {dimension_numbers = #tpu.dot_dimension_numbers<[1], [0], [0], [1], [0, 0, 1, 1], [], []>} : vector<16x8xf32>, vector<8x208xf32>, vector<16x208xf32> -> vector<16x208xf32>
    %c0_5 = arith.constant 0 : index
    %c0_6 = arith.constant 0 : index
    %6 = vector.load %arg4[%c0_5, %c0_6] : memref<1x208xf32, #tpu.memory_space<vmem>>, vector<1x208xf32>
    %7 = vector.broadcast %6 : vector<1x208xf32> to vector<16x208xf32>
    %8 = arith.addf %5, %7 : vector<16x208xf32>
    %9 = vector.extract_strided_slice %8 {offsets = [0, 192], sizes = [16, 16], strides = [1, 1]} : vector<16x208xf32> to vector<16x16xf32>
    %10 = vector.extract_strided_slice %8 {offsets = [0, 0], sizes = [16, 16], strides = [1, 1]} : vector<16x208xf32> to vector<16x16xf32>
    %11 = vector.extract_strided_slice %8 {offsets = [0, 16], sizes = [16, 16], strides = [1, 1]} : vector<16x208xf32> to vector<16x16xf32>
    %12 = vector.extract_strided_slice %8 {offsets = [0, 32], sizes = [16, 16], strides = [1, 1]} : vector<16x208xf32> to vector<16x16xf32>
    %13 = tpu.transpose %11, [1, 0] : vector<16x16xf32> -> vector<16x16xf32>
    %cst_7 = arith.constant dense<0.000000e+00> : vector<16x16xf32>
    %14 = tpu.matmul %10, %13, %cst_7 {dimension_numbers = #tpu.dot_dimension_numbers<[1], [0], [0], [1], [0, 0, 1, 1], [], []>} : vector<16x16xf32>, vector<16x16xf32>, vector<16x16xf32> -> vector<16x16xf32>
    %cst_8 = arith.constant 2.500000e-01 : f32
    %15 = vector.broadcast %cst_8 : f32 to vector<16x16xf32>
    %16 = arith.mulf %14, %15 : vector<16x16xf32>
    %cst_9 = arith.constant -1.000000e+30 : f32
    %17 = vector.broadcast %cst_9 : f32 to vector<16x16xf32>
    %18 = arith.select %2, %16, %17 : vector<16x16xi1>, vector<16x16xf32>
    %cst_10 = arith.constant dense<0xFF800000> : vector<16xf32>
    %19 = vector.multi_reduction <maximumf>, %18, %cst_10 [1] : vector<16x16xf32> to vector<16xf32>
    %20 = vector.shape_cast %19 : vector<16xf32> to vector<16x1xf32>
    %21 = vector.broadcast %20 : vector<16x1xf32> to vector<16x16xf32>
    %22 = arith.subf %18, %21 : vector<16x16xf32>
    %23 = math.exp %22 : vector<16x16xf32>
    %cst_11 = arith.constant dense<0.000000e+00> : vector<16xf32>
    %24 = vector.multi_reduction <add>, %23, %cst_11 [1] : vector<16x16xf32> to vector<16xf32>
    %25 = vector.shape_cast %24 : vector<16xf32> to vector<16x1xf32>
    %26 = tpu.reciprocal %25 {approx = true} : vector<16x1xf32> -> vector<16x1xf32>
    %27 = vector.broadcast %26 : vector<16x1xf32> to vector<16x16xf32>
    %28 = arith.mulf %23, %27 : vector<16x16xf32>
    %cst_12 = arith.constant dense<0.000000e+00> : vector<16x16xf32>
    %29 = tpu.matmul %28, %12, %cst_12 {dimension_numbers = #tpu.dot_dimension_numbers<[1], [0], [0], [1], [0, 0, 1, 1], [], []>} : vector<16x16xf32>, vector<16x16xf32>, vector<16x16xf32> -> vector<16x16xf32>
    %cst_13 = arith.constant -1.000000e+29 : f32
    %30 = vector.broadcast %cst_13 : f32 to vector<16x1xf32>
    %31 = arith.cmpf ogt, %20, %30 : vector<16x1xf32>
    %cst_14 = arith.constant 0.000000e+00 : f32
    %32 = vector.shape_cast %31 : vector<16x1xi1> to vector<16x1xi1>
    %33 = vector.broadcast %32 : vector<16x1xi1> to vector<16x16xi1>
    %34 = vector.broadcast %cst_14 : f32 to vector<16x16xf32>
    %35 = arith.select %33, %29, %34 : vector<16x16xi1>, vector<16x16xf32>
    %36 = vector.extract_strided_slice %8 {offsets = [0, 48], sizes = [16, 16], strides = [1, 1]} : vector<16x208xf32> to vector<16x16xf32>
    %37 = vector.extract_strided_slice %8 {offsets = [0, 64], sizes = [16, 16], strides = [1, 1]} : vector<16x208xf32> to vector<16x16xf32>
    %38 = vector.extract_strided_slice %8 {offsets = [0, 80], sizes = [16, 16], strides = [1, 1]} : vector<16x208xf32> to vector<16x16xf32>
    %39 = tpu.transpose %37, [1, 0] : vector<16x16xf32> -> vector<16x16xf32>
    %cst_15 = arith.constant dense<0.000000e+00> : vector<16x16xf32>
    %40 = tpu.matmul %36, %39, %cst_15 {dimension_numbers = #tpu.dot_dimension_numbers<[1], [0], [0], [1], [0, 0, 1, 1], [], []>} : vector<16x16xf32>, vector<16x16xf32>, vector<16x16xf32> -> vector<16x16xf32>
    %cst_16 = arith.constant 2.500000e-01 : f32
    %41 = vector.broadcast %cst_16 : f32 to vector<16x16xf32>
    %42 = arith.mulf %40, %41 : vector<16x16xf32>
    %cst_17 = arith.constant -1.000000e+30 : f32
    %43 = vector.broadcast %cst_17 : f32 to vector<16x16xf32>
    %44 = arith.select %2, %42, %43 : vector<16x16xi1>, vector<16x16xf32>
    %cst_18 = arith.constant dense<0xFF800000> : vector<16xf32>
    %45 = vector.multi_reduction <maximumf>, %44, %cst_18 [1] : vector<16x16xf32> to vector<16xf32>
    %46 = vector.shape_cast %45 : vector<16xf32> to vector<16x1xf32>
    %47 = vector.broadcast %46 : vector<16x1xf32> to vector<16x16xf32>
    %48 = arith.subf %44, %47 : vector<16x16xf32>
    %49 = math.exp %48 : vector<16x16xf32>
    %cst_19 = arith.constant dense<0.000000e+00> : vector<16xf32>
    %50 = vector.multi_reduction <add>, %49, %cst_19 [1] : vector<16x16xf32> to vector<16xf32>
    %51 = vector.shape_cast %50 : vector<16xf32> to vector<16x1xf32>
    %52 = tpu.reciprocal %51 {approx = true} : vector<16x1xf32> -> vector<16x1xf32>
    %53 = vector.broadcast %52 : vector<16x1xf32> to vector<16x16xf32>
    %54 = arith.mulf %49, %53 : vector<16x16xf32>
    %cst_20 = arith.constant dense<0.000000e+00> : vector<16x16xf32>
    %55 = tpu.matmul %54, %38, %cst_20 {dimension_numbers = #tpu.dot_dimension_numbers<[1], [0], [0], [1], [0, 0, 1, 1], [], []>} : vector<16x16xf32>, vector<16x16xf32>, vector<16x16xf32> -> vector<16x16xf32>
    %cst_21 = arith.constant -1.000000e+29 : f32
    %56 = vector.broadcast %cst_21 : f32 to vector<16x1xf32>
    %57 = arith.cmpf ogt, %46, %56 : vector<16x1xf32>
    %cst_22 = arith.constant 0.000000e+00 : f32
    %58 = vector.shape_cast %57 : vector<16x1xi1> to vector<16x1xi1>
    %59 = vector.broadcast %58 : vector<16x1xi1> to vector<16x16xi1>
    %60 = vector.broadcast %cst_22 : f32 to vector<16x16xf32>
    %61 = arith.select %59, %55, %60 : vector<16x16xi1>, vector<16x16xf32>
    %62 = arith.addf %35, %61 : vector<16x16xf32>
    %63 = vector.extract_strided_slice %8 {offsets = [0, 96], sizes = [16, 16], strides = [1, 1]} : vector<16x208xf32> to vector<16x16xf32>
    %64 = vector.extract_strided_slice %8 {offsets = [0, 112], sizes = [16, 16], strides = [1, 1]} : vector<16x208xf32> to vector<16x16xf32>
    %65 = vector.extract_strided_slice %8 {offsets = [0, 128], sizes = [16, 16], strides = [1, 1]} : vector<16x208xf32> to vector<16x16xf32>
    %66 = tpu.transpose %64, [1, 0] : vector<16x16xf32> -> vector<16x16xf32>
    %cst_23 = arith.constant dense<0.000000e+00> : vector<16x16xf32>
    %67 = tpu.matmul %63, %66, %cst_23 {dimension_numbers = #tpu.dot_dimension_numbers<[1], [0], [0], [1], [0, 0, 1, 1], [], []>} : vector<16x16xf32>, vector<16x16xf32>, vector<16x16xf32> -> vector<16x16xf32>
    %cst_24 = arith.constant 2.500000e-01 : f32
    %68 = vector.broadcast %cst_24 : f32 to vector<16x16xf32>
    %69 = arith.mulf %67, %68 : vector<16x16xf32>
    %cst_25 = arith.constant -1.000000e+30 : f32
    %70 = vector.broadcast %cst_25 : f32 to vector<16x16xf32>
    %71 = arith.select %2, %69, %70 : vector<16x16xi1>, vector<16x16xf32>
    %cst_26 = arith.constant dense<0xFF800000> : vector<16xf32>
    %72 = vector.multi_reduction <maximumf>, %71, %cst_26 [1] : vector<16x16xf32> to vector<16xf32>
    %73 = vector.shape_cast %72 : vector<16xf32> to vector<16x1xf32>
    %74 = vector.broadcast %73 : vector<16x1xf32> to vector<16x16xf32>
    %75 = arith.subf %71, %74 : vector<16x16xf32>
    %76 = math.exp %75 : vector<16x16xf32>
    %cst_27 = arith.constant dense<0.000000e+00> : vector<16xf32>
    %77 = vector.multi_reduction <add>, %76, %cst_27 [1] : vector<16x16xf32> to vector<16xf32>
    %78 = vector.shape_cast %77 : vector<16xf32> to vector<16x1xf32>
    %79 = tpu.reciprocal %78 {approx = true} : vector<16x1xf32> -> vector<16x1xf32>
    %80 = vector.broadcast %79 : vector<16x1xf32> to vector<16x16xf32>
    %81 = arith.mulf %76, %80 : vector<16x16xf32>
    %cst_28 = arith.constant dense<0.000000e+00> : vector<16x16xf32>
    %82 = tpu.matmul %81, %65, %cst_28 {dimension_numbers = #tpu.dot_dimension_numbers<[1], [0], [0], [1], [0, 0, 1, 1], [], []>} : vector<16x16xf32>, vector<16x16xf32>, vector<16x16xf32> -> vector<16x16xf32>
    %cst_29 = arith.constant -1.000000e+29 : f32
    %83 = vector.broadcast %cst_29 : f32 to vector<16x1xf32>
    %84 = arith.cmpf ogt, %73, %83 : vector<16x1xf32>
    %cst_30 = arith.constant 0.000000e+00 : f32
    %85 = vector.shape_cast %84 : vector<16x1xi1> to vector<16x1xi1>
    %86 = vector.broadcast %85 : vector<16x1xi1> to vector<16x16xi1>
    %87 = vector.broadcast %cst_30 : f32 to vector<16x16xf32>
    %88 = arith.select %86, %82, %87 : vector<16x16xi1>, vector<16x16xf32>
    %89 = arith.addf %62, %88 : vector<16x16xf32>
    %90 = vector.extract_strided_slice %8 {offsets = [0, 144], sizes = [16, 16], strides = [1, 1]} : vector<16x208xf32> to vector<16x16xf32>
    %91 = vector.extract_strided_slice %8 {offsets = [0, 160], sizes = [16, 16], strides = [1, 1]} : vector<16x208xf32> to vector<16x16xf32>
    %92 = vector.extract_strided_slice %8 {offsets = [0, 176], sizes = [16, 16], strides = [1, 1]} : vector<16x208xf32> to vector<16x16xf32>
    %93 = tpu.transpose %91, [1, 0] : vector<16x16xf32> -> vector<16x16xf32>
    %cst_31 = arith.constant dense<0.000000e+00> : vector<16x16xf32>
    %94 = tpu.matmul %90, %93, %cst_31 {dimension_numbers = #tpu.dot_dimension_numbers<[1], [0], [0], [1], [0, 0, 1, 1], [], []>} : vector<16x16xf32>, vector<16x16xf32>, vector<16x16xf32> -> vector<16x16xf32>
    %cst_32 = arith.constant 2.500000e-01 : f32
    %95 = vector.broadcast %cst_32 : f32 to vector<16x16xf32>
    %96 = arith.mulf %94, %95 : vector<16x16xf32>
    %cst_33 = arith.constant -1.000000e+30 : f32
    %97 = vector.broadcast %cst_33 : f32 to vector<16x16xf32>
    %98 = arith.select %2, %96, %97 : vector<16x16xi1>, vector<16x16xf32>
    %cst_34 = arith.constant dense<0xFF800000> : vector<16xf32>
    %99 = vector.multi_reduction <maximumf>, %98, %cst_34 [1] : vector<16x16xf32> to vector<16xf32>
    %100 = vector.shape_cast %99 : vector<16xf32> to vector<16x1xf32>
    %101 = vector.broadcast %100 : vector<16x1xf32> to vector<16x16xf32>
    %102 = arith.subf %98, %101 : vector<16x16xf32>
    %103 = math.exp %102 : vector<16x16xf32>
    %cst_35 = arith.constant dense<0.000000e+00> : vector<16xf32>
    %104 = vector.multi_reduction <add>, %103, %cst_35 [1] : vector<16x16xf32> to vector<16xf32>
    %105 = vector.shape_cast %104 : vector<16xf32> to vector<16x1xf32>
    %106 = tpu.reciprocal %105 {approx = true} : vector<16x1xf32> -> vector<16x1xf32>
    %107 = vector.broadcast %106 : vector<16x1xf32> to vector<16x16xf32>
    %108 = arith.mulf %103, %107 : vector<16x16xf32>
    %cst_36 = arith.constant dense<0.000000e+00> : vector<16x16xf32>
    %109 = tpu.matmul %108, %92, %cst_36 {dimension_numbers = #tpu.dot_dimension_numbers<[1], [0], [0], [1], [0, 0, 1, 1], [], []>} : vector<16x16xf32>, vector<16x16xf32>, vector<16x16xf32> -> vector<16x16xf32>
    %cst_37 = arith.constant -1.000000e+29 : f32
    %110 = vector.broadcast %cst_37 : f32 to vector<16x1xf32>
    %111 = arith.cmpf ogt, %100, %110 : vector<16x1xf32>
    %cst_38 = arith.constant 0.000000e+00 : f32
    %112 = vector.shape_cast %111 : vector<16x1xi1> to vector<16x1xi1>
    %113 = vector.broadcast %112 : vector<16x1xi1> to vector<16x16xi1>
    %114 = vector.broadcast %cst_38 : f32 to vector<16x16xf32>
    %115 = arith.select %113, %109, %114 : vector<16x16xi1>, vector<16x16xf32>
    %116 = arith.addf %89, %115 : vector<16x16xf32>
    %cst_39 = arith.constant 2.500000e-01 : f32
    %117 = vector.broadcast %cst_39 : f32 to vector<16x16xf32>
    %118 = arith.mulf %116, %117 : vector<16x16xf32>
    %119 = arith.addf %118, %9 : vector<16x16xf32>
    %cst_40 = arith.constant 0.000000e+00 : f32
    %120 = vector.broadcast %cst_40 : f32 to vector<16x16xf32>
    %121 = arith.maximumf %119, %120 : vector<16x16xf32>
    %c0_41 = arith.constant 0 : index
    %c0_42 = arith.constant 0 : index
    %122 = vector.load %arg5[%c0_41, %c0_42] : memref<16x208xf32, #tpu.memory_space<vmem>>, vector<16x208xf32>
    %cst_43 = arith.constant dense<0.000000e+00> : vector<16x208xf32>
    %123 = tpu.matmul %121, %122, %cst_43 {dimension_numbers = #tpu.dot_dimension_numbers<[1], [0], [0], [1], [0, 0, 1, 1], [], []>} : vector<16x16xf32>, vector<16x208xf32>, vector<16x208xf32> -> vector<16x208xf32>
    %c0_44 = arith.constant 0 : index
    %c0_45 = arith.constant 0 : index
    %124 = vector.load %arg6[%c0_44, %c0_45] : memref<1x208xf32, #tpu.memory_space<vmem>>, vector<1x208xf32>
    %125 = vector.broadcast %124 : vector<1x208xf32> to vector<16x208xf32>
    %126 = arith.addf %123, %125 : vector<16x208xf32>
    %127 = vector.extract_strided_slice %126 {offsets = [0, 192], sizes = [16, 16], strides = [1, 1]} : vector<16x208xf32> to vector<16x16xf32>
    %128 = vector.extract_strided_slice %126 {offsets = [0, 0], sizes = [16, 16], strides = [1, 1]} : vector<16x208xf32> to vector<16x16xf32>
    %129 = vector.extract_strided_slice %126 {offsets = [0, 16], sizes = [16, 16], strides = [1, 1]} : vector<16x208xf32> to vector<16x16xf32>
    %130 = vector.extract_strided_slice %126 {offsets = [0, 32], sizes = [16, 16], strides = [1, 1]} : vector<16x208xf32> to vector<16x16xf32>
    %131 = tpu.transpose %129, [1, 0] : vector<16x16xf32> -> vector<16x16xf32>
    %cst_46 = arith.constant dense<0.000000e+00> : vector<16x16xf32>
    %132 = tpu.matmul %128, %131, %cst_46 {dimension_numbers = #tpu.dot_dimension_numbers<[1], [0], [0], [1], [0, 0, 1, 1], [], []>} : vector<16x16xf32>, vector<16x16xf32>, vector<16x16xf32> -> vector<16x16xf32>
    %cst_47 = arith.constant 2.500000e-01 : f32
    %133 = vector.broadcast %cst_47 : f32 to vector<16x16xf32>
    %134 = arith.mulf %132, %133 : vector<16x16xf32>
    %cst_48 = arith.constant -1.000000e+30 : f32
    %135 = vector.broadcast %cst_48 : f32 to vector<16x16xf32>
    %136 = arith.select %2, %134, %135 : vector<16x16xi1>, vector<16x16xf32>
    %cst_49 = arith.constant dense<0xFF800000> : vector<16xf32>
    %137 = vector.multi_reduction <maximumf>, %136, %cst_49 [1] : vector<16x16xf32> to vector<16xf32>
    %138 = vector.shape_cast %137 : vector<16xf32> to vector<16x1xf32>
    %139 = vector.broadcast %138 : vector<16x1xf32> to vector<16x16xf32>
    %140 = arith.subf %136, %139 : vector<16x16xf32>
    %141 = math.exp %140 : vector<16x16xf32>
    %cst_50 = arith.constant dense<0.000000e+00> : vector<16xf32>
    %142 = vector.multi_reduction <add>, %141, %cst_50 [1] : vector<16x16xf32> to vector<16xf32>
    %143 = vector.shape_cast %142 : vector<16xf32> to vector<16x1xf32>
    %144 = tpu.reciprocal %143 {approx = true} : vector<16x1xf32> -> vector<16x1xf32>
    %145 = vector.broadcast %144 : vector<16x1xf32> to vector<16x16xf32>
    %146 = arith.mulf %141, %145 : vector<16x16xf32>
    %cst_51 = arith.constant dense<0.000000e+00> : vector<16x16xf32>
    %147 = tpu.matmul %146, %130, %cst_51 {dimension_numbers = #tpu.dot_dimension_numbers<[1], [0], [0], [1], [0, 0, 1, 1], [], []>} : vector<16x16xf32>, vector<16x16xf32>, vector<16x16xf32> -> vector<16x16xf32>
    %cst_52 = arith.constant -1.000000e+29 : f32
    %148 = vector.broadcast %cst_52 : f32 to vector<16x1xf32>
    %149 = arith.cmpf ogt, %138, %148 : vector<16x1xf32>
    %cst_53 = arith.constant 0.000000e+00 : f32
    %150 = vector.shape_cast %149 : vector<16x1xi1> to vector<16x1xi1>
    %151 = vector.broadcast %150 : vector<16x1xi1> to vector<16x16xi1>
    %152 = vector.broadcast %cst_53 : f32 to vector<16x16xf32>
    %153 = arith.select %151, %147, %152 : vector<16x16xi1>, vector<16x16xf32>
    %154 = vector.extract_strided_slice %126 {offsets = [0, 48], sizes = [16, 16], strides = [1, 1]} : vector<16x208xf32> to vector<16x16xf32>
    %155 = vector.extract_strided_slice %126 {offsets = [0, 64], sizes = [16, 16], strides = [1, 1]} : vector<16x208xf32> to vector<16x16xf32>
    %156 = vector.extract_strided_slice %126 {offsets = [0, 80], sizes = [16, 16], strides = [1, 1]} : vector<16x208xf32> to vector<16x16xf32>
    %157 = tpu.transpose %155, [1, 0] : vector<16x16xf32> -> vector<16x16xf32>
    %cst_54 = arith.constant dense<0.000000e+00> : vector<16x16xf32>
    %158 = tpu.matmul %154, %157, %cst_54 {dimension_numbers = #tpu.dot_dimension_numbers<[1], [0], [0], [1], [0, 0, 1, 1], [], []>} : vector<16x16xf32>, vector<16x16xf32>, vector<16x16xf32> -> vector<16x16xf32>
    %cst_55 = arith.constant 2.500000e-01 : f32
    %159 = vector.broadcast %cst_55 : f32 to vector<16x16xf32>
    %160 = arith.mulf %158, %159 : vector<16x16xf32>
    %cst_56 = arith.constant -1.000000e+30 : f32
    %161 = vector.broadcast %cst_56 : f32 to vector<16x16xf32>
    %162 = arith.select %2, %160, %161 : vector<16x16xi1>, vector<16x16xf32>
    %cst_57 = arith.constant dense<0xFF800000> : vector<16xf32>
    %163 = vector.multi_reduction <maximumf>, %162, %cst_57 [1] : vector<16x16xf32> to vector<16xf32>
    %164 = vector.shape_cast %163 : vector<16xf32> to vector<16x1xf32>
    %165 = vector.broadcast %164 : vector<16x1xf32> to vector<16x16xf32>
    %166 = arith.subf %162, %165 : vector<16x16xf32>
    %167 = math.exp %166 : vector<16x16xf32>
    %cst_58 = arith.constant dense<0.000000e+00> : vector<16xf32>
    %168 = vector.multi_reduction <add>, %167, %cst_58 [1] : vector<16x16xf32> to vector<16xf32>
    %169 = vector.shape_cast %168 : vector<16xf32> to vector<16x1xf32>
    %170 = tpu.reciprocal %169 {approx = true} : vector<16x1xf32> -> vector<16x1xf32>
    %171 = vector.broadcast %170 : vector<16x1xf32> to vector<16x16xf32>
    %172 = arith.mulf %167, %171 : vector<16x16xf32>
    %cst_59 = arith.constant dense<0.000000e+00> : vector<16x16xf32>
    %173 = tpu.matmul %172, %156, %cst_59 {dimension_numbers = #tpu.dot_dimension_numbers<[1], [0], [0], [1], [0, 0, 1, 1], [], []>} : vector<16x16xf32>, vector<16x16xf32>, vector<16x16xf32> -> vector<16x16xf32>
    %cst_60 = arith.constant -1.000000e+29 : f32
    %174 = vector.broadcast %cst_60 : f32 to vector<16x1xf32>
    %175 = arith.cmpf ogt, %164, %174 : vector<16x1xf32>
    %cst_61 = arith.constant 0.000000e+00 : f32
    %176 = vector.shape_cast %175 : vector<16x1xi1> to vector<16x1xi1>
    %177 = vector.broadcast %176 : vector<16x1xi1> to vector<16x16xi1>
    %178 = vector.broadcast %cst_61 : f32 to vector<16x16xf32>
    %179 = arith.select %177, %173, %178 : vector<16x16xi1>, vector<16x16xf32>
    %180 = arith.addf %153, %179 : vector<16x16xf32>
    %181 = vector.extract_strided_slice %126 {offsets = [0, 96], sizes = [16, 16], strides = [1, 1]} : vector<16x208xf32> to vector<16x16xf32>
    %182 = vector.extract_strided_slice %126 {offsets = [0, 112], sizes = [16, 16], strides = [1, 1]} : vector<16x208xf32> to vector<16x16xf32>
    %183 = vector.extract_strided_slice %126 {offsets = [0, 128], sizes = [16, 16], strides = [1, 1]} : vector<16x208xf32> to vector<16x16xf32>
    %184 = tpu.transpose %182, [1, 0] : vector<16x16xf32> -> vector<16x16xf32>
    %cst_62 = arith.constant dense<0.000000e+00> : vector<16x16xf32>
    %185 = tpu.matmul %181, %184, %cst_62 {dimension_numbers = #tpu.dot_dimension_numbers<[1], [0], [0], [1], [0, 0, 1, 1], [], []>} : vector<16x16xf32>, vector<16x16xf32>, vector<16x16xf32> -> vector<16x16xf32>
    %cst_63 = arith.constant 2.500000e-01 : f32
    %186 = vector.broadcast %cst_63 : f32 to vector<16x16xf32>
    %187 = arith.mulf %185, %186 : vector<16x16xf32>
    %cst_64 = arith.constant -1.000000e+30 : f32
    %188 = vector.broadcast %cst_64 : f32 to vector<16x16xf32>
    %189 = arith.select %2, %187, %188 : vector<16x16xi1>, vector<16x16xf32>
    %cst_65 = arith.constant dense<0xFF800000> : vector<16xf32>
    %190 = vector.multi_reduction <maximumf>, %189, %cst_65 [1] : vector<16x16xf32> to vector<16xf32>
    %191 = vector.shape_cast %190 : vector<16xf32> to vector<16x1xf32>
    %192 = vector.broadcast %191 : vector<16x1xf32> to vector<16x16xf32>
    %193 = arith.subf %189, %192 : vector<16x16xf32>
    %194 = math.exp %193 : vector<16x16xf32>
    %cst_66 = arith.constant dense<0.000000e+00> : vector<16xf32>
    %195 = vector.multi_reduction <add>, %194, %cst_66 [1] : vector<16x16xf32> to vector<16xf32>
    %196 = vector.shape_cast %195 : vector<16xf32> to vector<16x1xf32>
    %197 = tpu.reciprocal %196 {approx = true} : vector<16x1xf32> -> vector<16x1xf32>
    %198 = vector.broadcast %197 : vector<16x1xf32> to vector<16x16xf32>
    %199 = arith.mulf %194, %198 : vector<16x16xf32>
    %cst_67 = arith.constant dense<0.000000e+00> : vector<16x16xf32>
    %200 = tpu.matmul %199, %183, %cst_67 {dimension_numbers = #tpu.dot_dimension_numbers<[1], [0], [0], [1], [0, 0, 1, 1], [], []>} : vector<16x16xf32>, vector<16x16xf32>, vector<16x16xf32> -> vector<16x16xf32>
    %cst_68 = arith.constant -1.000000e+29 : f32
    %201 = vector.broadcast %cst_68 : f32 to vector<16x1xf32>
    %202 = arith.cmpf ogt, %191, %201 : vector<16x1xf32>
    %cst_69 = arith.constant 0.000000e+00 : f32
    %203 = vector.shape_cast %202 : vector<16x1xi1> to vector<16x1xi1>
    %204 = vector.broadcast %203 : vector<16x1xi1> to vector<16x16xi1>
    %205 = vector.broadcast %cst_69 : f32 to vector<16x16xf32>
    %206 = arith.select %204, %200, %205 : vector<16x16xi1>, vector<16x16xf32>
    %207 = arith.addf %180, %206 : vector<16x16xf32>
    %208 = vector.extract_strided_slice %126 {offsets = [0, 144], sizes = [16, 16], strides = [1, 1]} : vector<16x208xf32> to vector<16x16xf32>
    %209 = vector.extract_strided_slice %126 {offsets = [0, 160], sizes = [16, 16], strides = [1, 1]} : vector<16x208xf32> to vector<16x16xf32>
    %210 = vector.extract_strided_slice %126 {offsets = [0, 176], sizes = [16, 16], strides = [1, 1]} : vector<16x208xf32> to vector<16x16xf32>
    %211 = tpu.transpose %209, [1, 0] : vector<16x16xf32> -> vector<16x16xf32>
    %cst_70 = arith.constant dense<0.000000e+00> : vector<16x16xf32>
    %212 = tpu.matmul %208, %211, %cst_70 {dimension_numbers = #tpu.dot_dimension_numbers<[1], [0], [0], [1], [0, 0, 1, 1], [], []>} : vector<16x16xf32>, vector<16x16xf32>, vector<16x16xf32> -> vector<16x16xf32>
    %cst_71 = arith.constant 2.500000e-01 : f32
    %213 = vector.broadcast %cst_71 : f32 to vector<16x16xf32>
    %214 = arith.mulf %212, %213 : vector<16x16xf32>
    %cst_72 = arith.constant -1.000000e+30 : f32
    %215 = vector.broadcast %cst_72 : f32 to vector<16x16xf32>
    %216 = arith.select %2, %214, %215 : vector<16x16xi1>, vector<16x16xf32>
    %cst_73 = arith.constant dense<0xFF800000> : vector<16xf32>
    %217 = vector.multi_reduction <maximumf>, %216, %cst_73 [1] : vector<16x16xf32> to vector<16xf32>
    %218 = vector.shape_cast %217 : vector<16xf32> to vector<16x1xf32>
    %219 = vector.broadcast %218 : vector<16x1xf32> to vector<16x16xf32>
    %220 = arith.subf %216, %219 : vector<16x16xf32>
    %221 = math.exp %220 : vector<16x16xf32>
    %cst_74 = arith.constant dense<0.000000e+00> : vector<16xf32>
    %222 = vector.multi_reduction <add>, %221, %cst_74 [1] : vector<16x16xf32> to vector<16xf32>
    %223 = vector.shape_cast %222 : vector<16xf32> to vector<16x1xf32>
    %224 = tpu.reciprocal %223 {approx = true} : vector<16x1xf32> -> vector<16x1xf32>
    %225 = vector.broadcast %224 : vector<16x1xf32> to vector<16x16xf32>
    %226 = arith.mulf %221, %225 : vector<16x16xf32>
    %cst_75 = arith.constant dense<0.000000e+00> : vector<16x16xf32>
    %227 = tpu.matmul %226, %210, %cst_75 {dimension_numbers = #tpu.dot_dimension_numbers<[1], [0], [0], [1], [0, 0, 1, 1], [], []>} : vector<16x16xf32>, vector<16x16xf32>, vector<16x16xf32> -> vector<16x16xf32>
    %cst_76 = arith.constant -1.000000e+29 : f32
    %228 = vector.broadcast %cst_76 : f32 to vector<16x1xf32>
    %229 = arith.cmpf ogt, %218, %228 : vector<16x1xf32>
    %cst_77 = arith.constant 0.000000e+00 : f32
    %230 = vector.shape_cast %229 : vector<16x1xi1> to vector<16x1xi1>
    %231 = vector.broadcast %230 : vector<16x1xi1> to vector<16x16xi1>
    %232 = vector.broadcast %cst_77 : f32 to vector<16x16xf32>
    %233 = arith.select %231, %227, %232 : vector<16x16xi1>, vector<16x16xf32>
    %234 = arith.addf %207, %233 : vector<16x16xf32>
    %cst_78 = arith.constant 2.500000e-01 : f32
    %235 = vector.broadcast %cst_78 : f32 to vector<16x16xf32>
    %236 = arith.mulf %234, %235 : vector<16x16xf32>
    %237 = arith.addf %236, %127 : vector<16x16xf32>
    %c0_79 = arith.constant 0 : index
    %c0_80 = arith.constant 0 : index
    %238 = vector.load %arg2[%c0_79, %c0_80] : memref<2x16xf32, #tpu.memory_space<vmem>>, vector<2x16xf32>
    %cst_81 = arith.constant dense<0.000000e+00> : vector<2x16xf32>
    %239 = tpu.matmul %238, %237, %cst_81 {dimension_numbers = #tpu.dot_dimension_numbers<[1], [0], [0], [1], [0, 0, 1, 1], [], []>} : vector<2x16xf32>, vector<16x16xf32>, vector<2x16xf32> -> vector<2x16xf32>
    %c0_82 = arith.constant 0 : index
    %c0_83 = arith.constant 0 : index
    %240 = vector.load %arg7[%c0_82, %c0_83] : memref<2x16xf32, #tpu.memory_space<vmem>>, vector<2x16xf32>
    tpu.vector_store %arg7[%c0_82, %c0_83], %239 {strides = array<i32>} : memref<2x16xf32, #tpu.memory_space<vmem>>, vector<2x16xf32>,
    return
  }
}

</mosaic_0001>

<llo_original>
// kernel: tpu_custom_call.1
$region0: #{tpu_custom_call.1}
  #allocation0 [shape = 'u32[]', space=smem, size = 0x4, offset = 0x4, fixed_abs, tag = 'smem constant byte address 0x4 - core index']
  #allocation1 [shape = 'u32[144,128]{1,0:T(1,128)}', space=vmem, size = 0x12000, scoped, tag = 'internal scratch']
  %s0 = inlined_call_operand.vmem [shape: f32[16,8], index: 0, kind: input, shape index: {}]
  %s1 = inlined_call_operand.hbm [shape: s8[16,16], index: 1, kind: input, shape index: {}]
  %s2 = inlined_call_operand.hbm [shape: f32[2,16], index: 2, kind: input, shape index: {}]
  %s3 = inlined_call_operand.hbm [shape: f32[8,208], index: 3, kind: input, shape index: {}]
  %s4 = inlined_call_operand.hbm [shape: f32[1,208], index: 4, kind: input, shape index: {}]
  %s5 = inlined_call_operand.vmem [shape: f32[16,208], index: 5, kind: input, shape index: {}]
  %s6 = inlined_call_operand.vmem [shape: f32[1,208], index: 6, kind: input, shape index: {}]
  %s7 = inlined_call_operand.hbm [shape: f32[2,16], index: 7, kind: output, shape index: {}]
  %s8 = sld [smem:[#allocation0]]
  $region54: #{tpu_custom_call.1} parent=0
    _
  %s10 = ssub.s32 1, %s8
  %s11 = scalar_select 0, %s10, %s8
  $region1: #{tpu_custom_call.1} parent=0
    #allocation2 [shape = 'u8[2048]{0}', space=vmem, size = 0x800, scoped, tag = 'input window, operand 1, single buffered']
    #allocation3 [shape = 's32[1]{0}', space=sflag, size = 0x4, scoped, tag = 'scoped memory for tpu_custom_call.1']
    #allocation4 [shape = 's32[1]{0}', space=sflag, size = 0x4, scoped, tag = 'scoped memory for tpu_custom_call.1']
    #allocation5 [shape = 'u8[1024]{0}', space=vmem, size = 0x400, scoped, tag = 'input window, operand 2, single buffered']
    #allocation6 [shape = 's32[1]{0}', space=sflag, size = 0x4, scoped, tag = 'scoped memory for tpu_custom_call.1']
    #allocation7 [shape = 'u8[8192]{0}', space=vmem, size = 0x2000, scoped, tag = 'input window, operand 3, single buffered']
    #allocation8 [shape = 'u8[1024]{0}', space=vmem, size = 0x400, scoped, tag = 'input window, operand 4, single buffered']
    #allocation9 [shape = 's32[1]{0}', space=sflag, size = 0x4, scoped, tag = 'scoped memory for tpu_custom_call.1']
    #allocation10 [shape = 'u8[1024]{0}', space=vmem, size = 0x400, scoped, tag = 'output window, operand 0, single buffered']
    %12 = vsyncpa [#allocation3], 0
    %13 = vsyncpa [#allocation6], 0
    %14 = vsyncpa [#allocation9], 0
    %15 = vsyncpa [#allocation4], 0
    // Predicated region
    $region2: #{tpu_custom_call.1} parent=1 // pred_check
      _
    $region3: #{tpu_custom_call.1} parent=1 // pred_check_branch
      %17 = sbr.rel (0) target = $region5
    $region4: #{tpu_custom_call.1} parent=1 // pred_region
      _
    $region5: #{tpu_custom_call.1} parent=1 // pred_fallthru
      _
    // Predicated region
    $region6: #{tpu_custom_call.1} parent=1 // pred_check
      _
    $region7: #{tpu_custom_call.1} parent=1 // pred_check_branch
      %19 = sbr.rel (0) target = $region9
    $region8: #{tpu_custom_call.1} parent=1 // pred_region
      %s21 = ssub.s32 64, 64
      %22 = vsyncadd [#allocation3], %s21
      %s23 = sshll.u32 [#allocation2], 4
      %s24 = int_to_ptr.vmem [resolvable:$true] %s23
      %29 = dma.hbm_to_vmem [thread:$0]  %s1, 64, %s24, [#allocation3], 32, 32, 2
    $region9: #{tpu_custom_call.1} parent=1 // pred_fallthru
      _
    // Predicated region
    $region10: #{tpu_custom_call.1} parent=1 // pred_check
      _
    $region11: #{tpu_custom_call.1} parent=1 // pred_check_branch
      %31 = sbr.rel (0) target = $region13
    $region12: #{tpu_custom_call.1} parent=1 // pred_region
      %s33 = ssub.s32 32, 32
      %34 = vsyncadd [#allocation6], %s33
      %s36 = sshll.u32 [#allocation5], 4
      %s37 = int_to_ptr.vmem [resolvable:$true] %s36
      %39 = dma.hbm_to_vmem [thread:$0]  %s2, 32, %s37, [#allocation6]
    $region13: #{tpu_custom_call.1} parent=1 // pred_fallthru
      _
    // Predicated region
    $region14: #{tpu_custom_call.1} parent=1 // pred_check
      _
    $region15: #{tpu_custom_call.1} parent=1 // pred_check_branch
      %41 = sbr.rel (0) target = $region17
    $region16: #{tpu_custom_call.1} parent=1 // pred_region
      %s43 = ssub.s32 256, 256
      %44 = vsyncadd [#allocation6], %s43
      %s46 = sshll.u32 [#allocation7], 4
      %s47 = int_to_ptr.vmem [resolvable:$true] %s46
      %49 = dma.hbm_to_vmem [thread:$0]  %s3, 256, %s47, [#allocation6]
    $region17: #{tpu_custom_call.1} parent=1 // pred_fallthru
      _
    // Predicated region
    $region18: #{tpu_custom_call.1} parent=1 // pred_check
      _
    $region19: #{tpu_custom_call.1} parent=1 // pred_check_branch
      %51 = sbr.rel (0) target = $region21
    $region20: #{tpu_custom_call.1} parent=1 // pred_region
      %s53 = ssub.s32 32, 32
      %54 = vsyncadd [#allocation9], %s53
      %s56 = sshll.u32 [#allocation8], 4
      %s57 = int_to_ptr.vmem [resolvable:$true] %s56
      %59 = dma.hbm_to_vmem [thread:$0]  %s4, 32, %s57, [#allocation9]
    $region21: #{tpu_custom_call.1} parent=1 // pred_fallthru
      _
    // Predicated region
    $region22: #{tpu_custom_call.1} parent=1 // pred_check
      _
    $region23: #{tpu_custom_call.1} parent=1 // pred_check_branch
      %61 = sbr.rel (0) target = $region25
    $region24: #{tpu_custom_call.1} parent=1 // pred_region
      _
    $region25: #{tpu_custom_call.1} parent=1 // pred_fallthru
      _
    // Predicated region
    $region26: #{tpu_custom_call.1} parent=1 // pred_check
      _
    $region27: #{tpu_custom_call.1} parent=1 // pred_check_branch
      %63 = sbr.rel (0) target = $region29
    $region28: #{tpu_custom_call.1} parent=1 // pred_region
      _
    $region29: #{tpu_custom_call.1} parent=1 // pred_fallthru
      _
    // Predicated region
    $region30: #{tpu_custom_call.1} parent=1 // pred_check
      _
    $region31: #{tpu_custom_call.1} parent=1 // pred_check_branch
      %65 = sbr.rel (0) target = $region33
    $region32: #{tpu_custom_call.1} parent=1 // pred_region
      %66 = dma.done [#allocation3], 64
    $region33: #{tpu_custom_call.1} parent=1 // pred_fallthru
      _
    // Predicated region
    $region34: #{tpu_custom_call.1} parent=1 // pred_check
      _
    $region35: #{tpu_custom_call.1} parent=1 // pred_check_branch
      %68 = sbr.rel (0) target = $region37
    $region36: #{tpu_custom_call.1} parent=1 // pred_region
      %69 = dma.done [#allocation6], 32
    $region37: #{tpu_custom_call.1} parent=1 // pred_fallthru
      _
    // Predicated region
    $region38: #{tpu_custom_call.1} parent=1 // pred_check
      _
    $region39: #{tpu_custom_call.1} parent=1 // pred_check_branch
      %71 = sbr.rel (0) target = $region41
    $region40: #{tpu_custom_call.1} parent=1 // pred_region
      %72 = dma.done [#allocation6], 256
    $region41: #{tpu_custom_call.1} parent=1 // pred_fallthru
      _
    // Predicated region
    $region42: #{tpu_custom_call.1} parent=1 // pred_check
      _
    $region43: #{tpu_custom_call.1} parent=1 // pred_check_branch
      %74 = sbr.rel (0) target = $region45
    $region44: #{tpu_custom_call.1} parent=1 // pred_region
      %75 = dma.done [#allocation9], 32
    $region45: #{tpu_custom_call.1} parent=1 // pred_fallthru
      _
    %v78 = vld [vmem:[#allocation2] sm:$0x3]
    %v79 = vld [vmem:[#allocation2 + $0x2] sm:$0x3]
    %vm80 = vnez %v78
    %vm81 = vnez %v79
    %v82 = vld [vmem:[%s0] sm:$0xff]
    %v83 = vld [vmem:[%s0 + $0x8] sm:$0xff]
    %v84 = vld [vmem:[#allocation7] sm:$0xff]
    %v85 = vld [vmem:[#allocation7 + $0x8] sm:$0xff]
    %v86 = vld [vmem:[#allocation8] sm:$0x3]
    %v88 = vlaneseq
    %v89 = vshrl.u32 %v88, 7
    %v90 = vsub.s32 0, %v89
    %v91 = vrot.slane %v86, %v90
    %v92 = vlaneseq
    %v93 = vshrl.u32 %v92, 7
    %v94 = vsub.s32 1, %v93
    %v95 = vrot.slane %v86, %v94
    %vm98 = vcmask 64512
    %v100 = vsel %vm98, %v82, 0
    %v103 = vsel %vm98, %v83, 0
    %105 = vmatprep.subr.mxu0 0.0
    %106 = vmatpush1.msra.mxu0 0.0
    %107 = vmatprep.subr.mxu0 0.0
    %108 = vmatpush1.msra.mxu0 0.0
    %109 = vmatprep.subr.mxu0 0.0
    %110 = vmatpush1.msra.mxu0 0.0
    %111 = vmatprep.subr.mxu0 0.0
    %112 = vmatpush1.msra.mxu0 0.0
    %113 = vmatprep.subr.mxu0 0.0
    %114 = vmatpush1.msra.mxu0 0.0
    %115 = vmatprep.subr.mxu0 0.0
    %116 = vmatpush1.msra.mxu0 0.0
    %117 = vmatprep.subr.mxu0 0.0
    %118 = vmatpush1.msra.mxu0 0.0
    %119 = vmatprep.subr.mxu0 0.0
    %120 = vmatpush1.msra.mxu0 0.0
    %121 = vmatprep.subr.mxu0 0.0
    %122 = vmatpush1.msra.mxu0 0.0
    %123 = vmatprep.subr.mxu0 0.0
    %124 = vmatpush1.msra.mxu0 0.0
    %125 = vmatprep.subr.mxu0 0.0
    %126 = vmatpush1.msra.mxu0 0.0
    %127 = vmatprep.subr.mxu0 0.0
    %128 = vmatpush1.msra.mxu0 0.0
    %129 = vmatprep.subr.mxu0 0.0
    %130 = vmatpush1.msra.mxu0 0.0
    %131 = vmatprep.subr.mxu0 0.0
    %132 = vmatpush1.msra.mxu0 0.0
    %133 = vmatprep.subr.mxu0 0.0
    %134 = vmatpush1.msra.mxu0 0.0
    %135 = vmatprep.subr.mxu0 %v85
    %136 = vmatpush1.msra.mxu0 %v84
    %137 = vmatprep.subr.mxu0 0.0
    %138 = vmatpush2.msra.mxu0 0.0
    %139 = vmatprep.subr.mxu0 0.0
    %140 = vmatpush2.msra.mxu0 0.0
    %141 = vmatprep.subr.mxu0 0.0
    %142 = vmatpush2.msra.mxu0 0.0
    %143 = vmatprep.subr.mxu0 0.0
    %144 = vmatpush2.msra.mxu0 0.0
    %145 = vmatprep.subr.mxu0 0.0
    %146 = vmatpush2.msra.mxu0 0.0
    %147 = vmatprep.subr.mxu0 0.0
    %148 = vmatpush2.msra.mxu0 0.0
    %149 = vmatprep.subr.mxu0 0.0
    %150 = vmatpush2.msra.mxu0 0.0
    %151 = vmatprep.subr.mxu0 0.0
    %152 = vmatpush2.msra.mxu0 0.0
    %153 = vmatprep.subr.mxu0 0.0
    %154 = vmatpush2.msra.mxu0 0.0
    %155 = vmatprep.subr.mxu0 0.0
    %156 = vmatpush2.msra.mxu0 0.0
    %157 = vmatprep.subr.mxu0 0.0
    %158 = vmatpush2.msra.mxu0 0.0
    %159 = vmatprep.subr.mxu0 0.0
    %160 = vmatpush2.msra.mxu0 0.0
    %161 = vmatprep.subr.mxu0 0.0
    %162 = vmatpush2.msra.mxu0 0.0
    %163 = vmatprep.subr.mxu0 0.0
    %164 = vmatpush2.msra.mxu0 0.0
    %165 = vmatprep.subr.mxu0 0.0
    %166 = vmatpush2.msra.mxu0 0.0
    %167 = vmatprep.subr.mxu0 0.0
    %168 = vmatpush2.msra.mxu0 0.0
    %169 = vmatprep.mubr.f32.mxu0 0.0
    %170 = vmatmul.mubr.f32.gmra.mxu0 %v100
    %v171 = vpop.f32.mrf.mxu0
    %v172 = vadd.f32 %v91, %v171
    %v173 = vpop.f32.mrf.mxu0
    %v174 = vadd.f32 %v95, %v173
    %175 = vmatprep.mubr.f32.mxu0 0.0
    %176 = vmatmul.mubr.f32.gmra.mxu0 %v103
    %v177 = vpop.f32.mrf.mxu0
    %v178 = vadd.f32 %v91, %v177
    %v179 = vpop.f32.mrf.mxu0
    %v180 = vadd.f32 %v95, %v179
    %181 = vdwg.mxu0
    %184 = vrot.lane.b32.xlu0 %v172, 112
    %v185 = vpop.permute.xlu0 %184
    %186 = vrot.lane.b32.xlu0 %v178, 112
    %v187 = vpop.permute.xlu0 %186
    %vm188 = vcmask 130048
    %v189 = vsel %vm188, %v172, 0
    %v191 = vsel %vm188, %v178, 0
    %v193 = vsel %vm188, %v185, 0
    %v195 = vsel %vm188, %v187, 0
    %197 = vmatprep.subr.mxu0 0.0
    %198 = vmatpush1.xpose.msra.mxu0 0.0
    %199 = vmatprep.subr.mxu0 0.0
    %200 = vmatpush1.xpose.msra.mxu0 0.0
    %201 = vmatprep.subr.mxu0 0.0
    %202 = vmatpush1.xpose.msra.mxu0 0.0
    %203 = vmatprep.subr.mxu0 0.0
    %204 = vmatpush1.xpose.msra.mxu0 0.0
    %205 = vmatprep.subr.mxu0 0.0
    %206 = vmatpush1.xpose.msra.mxu0 0.0
    %207 = vmatprep.subr.mxu0 0.0
    %208 = vmatpush1.xpose.msra.mxu0 0.0
    %209 = vmatprep.subr.mxu0 0.0
    %210 = vmatpush1.xpose.msra.mxu0 0.0
    %211 = vmatprep.subr.mxu0 0.0
    %212 = vmatpush1.xpose.msra.mxu0 0.0
    %213 = vmatprep.subr.mxu0 0.0
    %214 = vmatpush1.xpose.msra.mxu0 0.0
    %215 = vmatprep.subr.mxu0 0.0
    %216 = vmatpush1.xpose.msra.mxu0 0.0
    %217 = vmatprep.subr.mxu0 0.0
    %218 = vmatpush1.xpose.msra.mxu0 0.0
    %219 = vmatprep.subr.mxu0 0.0
    %220 = vmatpush1.xpose.msra.mxu0 0.0
    %221 = vmatprep.subr.mxu0 0.0
    %222 = vmatpush1.xpose.msra.mxu0 0.0
    %223 = vmatprep.subr.mxu0 0.0
    %224 = vmatpush1.xpose.msra.mxu0 0.0
    %225 = vmatprep.subr.mxu0 0.0
    %226 = vmatpush1.xpose.msra.mxu0 %v195
    %227 = vmatprep.subr.mxu0 0.0
    %228 = vmatpush1.xpose.msra.mxu0 %v193
    %229 = vmatprep.subr.mxu0 0.0
    %230 = vmatpush2.xpose.msra.mxu0 0.0
    %231 = vmatprep.subr.mxu0 0.0
    %232 = vmatpush2.xpose.msra.mxu0 0.0
    %233 = vmatprep.subr.mxu0 0.0
    %234 = vmatpush2.xpose.msra.mxu0 0.0
    %235 = vmatprep.subr.mxu0 0.0
    %236 = vmatpush2.xpose.msra.mxu0 0.0
    %237 = vmatprep.subr.mxu0 0.0
    %238 = vmatpush2.xpose.msra.mxu0 0.0
    %239 = vmatprep.subr.mxu0 0.0
    %240 = vmatpush2.xpose.msra.mxu0 0.0
    %241 = vmatprep.subr.mxu0 0.0
    %242 = vmatpush2.xpose.msra.mxu0 0.0
    %243 = vmatprep.subr.mxu0 0.0
    %244 = vmatpush2.xpose.msra.mxu0 0.0
    %245 = vmatprep.subr.mxu0 0.0
    %246 = vmatpush2.xpose.msra.mxu0 0.0
    %247 = vmatprep.subr.mxu0 0.0
    %248 = vmatpush2.xpose.msra.mxu0 0.0
    %249 = vmatprep.subr.mxu0 0.0
    %250 = vmatpush2.xpose.msra.mxu0 0.0
    %251 = vmatprep.subr.mxu0 0.0
    %252 = vmatpush2.xpose.msra.mxu0 0.0
    %253 = vmatprep.subr.mxu0 0.0
    %254 = vmatpush2.xpose.msra.mxu0 0.0
    %255 = vmatprep.subr.mxu0 0.0
    %256 = vmatpush2.xpose.msra.mxu0 0.0
    %257 = vmatprep.subr.mxu0 0.0
    %258 = vmatpush2.xpose.msra.mxu0 0.0
    %259 = vmatprep.subr.mxu0 0.0
    %260 = vmatpush2.xpose.msra.mxu0 0.0
    %261 = vmatprep.mubr.f32.mxu0 0.0
    %262 = vmatmul.mubr.f32.gmra.mxu0 %v189
    %v263 = vpop.f32.mrf.mxu0
    %v264 = vadd.f32 0.0, %v263
    %v265 = vpop.f32.mrf.mxu0
    %266 = vmatprep.mubr.f32.mxu0 0.0
    %267 = vmatmul.mubr.f32.gmra.mxu0 %v191
    %v268 = vpop.f32.mrf.mxu0
    %v269 = vadd.f32 0.0, %v268
    %v270 = vpop.f32.mrf.mxu0
    %271 = vdwg.mxu0
    %v272 = vmul.f32 %v264, 0.25
    %v273 = vmul.f32 %v269, 0.25
    %v274 = vsel %vm80, 16843009, 0
    %v275 = vsel %vm81, 16843009, 0
    %v276 = vunpack.c.0.s8 %v274
    %v277 = vunpack.c.0.s8 %v275
    %vm278 = vcmp.ne.s32.totalorder %v276, 0
    %vm279 = vcmp.ne.s32.totalorder %v277, 0
    %v280 = vsel %vm278, %v272, -1e+30
    %v281 = vsel %vm279, %v273, -1e+30
    %v282 = vsel %vm188, %v280, -inf
    %283 = vmax.xlane.f32.xlu0 %v282
    %v284 = vpop.xlane.xlu0 %283
    %v285 = vsel %vm188, %v281, -inf
    %286 = vmax.xlane.f32.xlu0 %v285
    %v287 = vpop.xlane.xlu0 %286
    %v288 = vsub.f32 %v280, %v284
    %v289 = vsub.f32 %v281, %v287
    %v290 = vmul.f32 %v288, 1.442695
    %v291 = vpow.pop %v290
    %v292 = vmul.f32 %v289, 1.442695
    %v293 = vpow.pop %v292
    %v294 = vsel %vm188, %v291, 0.0
    %295 = vadd.xlane.f32.xlu0 %v294
    %v296 = vpop.xlane.xlu0 %295
    %v297 = vsel %vm188, %v293, 0.0
    %298 = vadd.xlane.f32.xlu0 %v297
    %v299 = vpop.xlane.xlu0 %298
    %v300 = vrcp.pop %v296
    %v301 = vrcp.pop %v299
    %v302 = vmul.f32 %v291, %v300
    %v303 = vmul.f32 %v293, %v301
    %304 = vrot.lane.b32.xlu0 %v172, 96
    %v305 = vpop.permute.xlu0 %304
    %306 = vrot.lane.b32.xlu0 %v178, 96
    %v307 = vpop.permute.xlu0 %306
    %v311 = vsel %vm188, %v302, 0
    %v314 = vsel %vm188, %v303, 0
    %316 = vmatprep.subr.mxu0 0.0
    %317 = vmatpush1.msra.mxu0 0.0
    %318 = vmatprep.subr.mxu0 0.0
    %319 = vmatpush1.msra.mxu0 0.0
    %320 = vmatprep.subr.mxu0 0.0
    %321 = vmatpush1.msra.mxu0 0.0
    %322 = vmatprep.subr.mxu0 0.0
    %323 = vmatpush1.msra.mxu0 0.0
    %324 = vmatprep.subr.mxu0 0.0
    %325 = vmatpush1.msra.mxu0 0.0
    %326 = vmatprep.subr.mxu0 0.0
    %327 = vmatpush1.msra.mxu0 0.0
    %328 = vmatprep.subr.mxu0 0.0
    %329 = vmatpush1.msra.mxu0 0.0
    %330 = vmatprep.subr.mxu0 0.0
    %331 = vmatpush1.msra.mxu0 0.0
    %332 = vmatprep.subr.mxu0 0.0
    %333 = vmatpush1.msra.mxu0 0.0
    %334 = vmatprep.subr.mxu0 0.0
    %335 = vmatpush1.msra.mxu0 0.0
    %336 = vmatprep.subr.mxu0 0.0
    %337 = vmatpush1.msra.mxu0 0.0
    %338 = vmatprep.subr.mxu0 0.0
    %339 = vmatpush1.msra.mxu0 0.0
    %340 = vmatprep.subr.mxu0 0.0
    %341 = vmatpush1.msra.mxu0 0.0
    %342 = vmatprep.subr.mxu0 0.0
    %343 = vmatpush1.msra.mxu0 0.0
    %344 = vmatprep.subr.mxu0 0.0
    %345 = vmatpush1.msra.mxu0 %v307
    %346 = vmatprep.subr.mxu0 0.0
    %347 = vmatpush1.msra.mxu0 %v305
    %348 = vmatprep.subr.mxu0 0.0
    %349 = vmatpush2.msra.mxu0 0.0
    %350 = vmatprep.subr.mxu0 0.0
    %351 = vmatpush2.msra.mxu0 0.0
    %352 = vmatprep.subr.mxu0 0.0
    %353 = vmatpush2.msra.mxu0 0.0
    %354 = vmatprep.subr.mxu0 0.0
    %355 = vmatpush2.msra.mxu0 0.0
    %356 = vmatprep.subr.mxu0 0.0
    %357 = vmatpush2.msra.mxu0 0.0
    %358 = vmatprep.subr.mxu0 0.0
    %359 = vmatpush2.msra.mxu0 0.0
    %360 = vmatprep.subr.mxu0 0.0
    %361 = vmatpush2.msra.mxu0 0.0
    %362 = vmatprep.subr.mxu0 0.0
    %363 = vmatpush2.msra.mxu0 0.0
    %364 = vmatprep.subr.mxu0 0.0
    %365 = vmatpush2.msra.mxu0 0.0
    %366 = vmatprep.subr.mxu0 0.0
    %367 = vmatpush2.msra.mxu0 0.0
    %368 = vmatprep.subr.mxu0 0.0
    %369 = vmatpush2.msra.mxu0 0.0
    %370 = vmatprep.subr.mxu0 0.0
    %371 = vmatpush2.msra.mxu0 0.0
    %372 = vmatprep.subr.mxu0 0.0
    %373 = vmatpush2.msra.mxu0 0.0
    %374 = vmatprep.subr.mxu0 0.0
    %375 = vmatpush2.msra.mxu0 0.0
    %376 = vmatprep.subr.mxu0 0.0
    %377 = vmatpush2.msra.mxu0 0.0
    %378 = vmatprep.subr.mxu0 0.0
    %379 = vmatpush2.msra.mxu0 0.0
    %380 = vmatprep.mubr.f32.mxu0 0.0
    %381 = vmatmul.mubr.f32.gmra.mxu0 %v311
    %v382 = vpop.f32.mrf.mxu0
    %v383 = vadd.f32 0.0, %v382
    %v384 = vpop.f32.mrf.mxu0
    %385 = vmatprep.mubr.f32.mxu0 0.0
    %386 = vmatmul.mubr.f32.gmra.mxu0 %v314
    %v387 = vpop.f32.mrf.mxu0
    %v388 = vadd.f32 0.0, %v387
    %v389 = vpop.f32.mrf.mxu0
    %390 = vdwg.mxu0
    %vm391 = vcmp.gt.f32.partialorder %v284, -1e+29
    %vm392 = vcmp.gt.f32.partialorder %v287, -1e+29
    %v393 = vsel %vm391, 1, 0
    %v394 = vsel %vm392, 1, 0
    %vm395 = vcmp.eq.s32.totalorder %v393, 1
    %vm396 = vcmp.eq.s32.totalorder %v394, 1
    %v397 = vsel %vm395, %v383, 0.0
    %v398 = vsel %vm396, %v388, 0.0
    %399 = vrot.lane.b32.xlu0 %v172, 80
    %v400 = vpop.permute.xlu0 %399
    %401 = vrot.lane.b32.xlu0 %v178, 80
    %v402 = vpop.permute.xlu0 %401
    %403 = vrot.lane.b32.xlu0 %v172, 64
    %v404 = vpop.permute.xlu0 %403
    %405 = vrot.lane.b32.xlu0 %v178, 64
    %v406 = vpop.permute.xlu0 %405
    %v407 = vsel %vm188, %v400, 0
    %v409 = vsel %vm188, %v402, 0
    %v411 = vsel %vm188, %v404, 0
    %v413 = vsel %vm188, %v406, 0
    %415 = vmatprep.subr.mxu0 0.0
    %416 = vmatpush1.xpose.msra.mxu0 0.0
    %417 = vmatprep.subr.mxu0 0.0
    %418 = vmatpush1.xpose.msra.mxu0 0.0
    %419 = vmatprep.subr.mxu0 0.0
    %420 = vmatpush1.xpose.msra.mxu0 0.0
    %421 = vmatprep.subr.mxu0 0.0
    %422 = vmatpush1.xpose.msra.mxu0 0.0
    %423 = vmatprep.subr.mxu0 0.0
    %424 = vmatpush1.xpose.msra.mxu0 0.0
    %425 = vmatprep.subr.mxu0 0.0
    %426 = vmatpush1.xpose.msra.mxu0 0.0
    %427 = vmatprep.subr.mxu0 0.0
    %428 = vmatpush1.xpose.msra.mxu0 0.0
    %429 = vmatprep.subr.mxu0 0.0
    %430 = vmatpush1.xpose.msra.mxu0 0.0
    %431 = vmatprep.subr.mxu0 0.0
    %432 = vmatpush1.xpose.msra.mxu0 0.0
    %433 = vmatprep.subr.mxu0 0.0
    %434 = vmatpush1.xpose.msra.mxu0 0.0
    %435 = vmatprep.subr.mxu0 0.0
    %436 = vmatpush1.xpose.msra.mxu0 0.0
    %437 = vmatprep.subr.mxu0 0.0
    %438 = vmatpush1.xpose.msra.mxu0 0.0
    %439 = vmatprep.subr.mxu0 0.0
    %440 = vmatpush1.xpose.msra.mxu0 0.0
    %441 = vmatprep.subr.mxu0 0.0
    %442 = vmatpush1.xpose.msra.mxu0 0.0
    %443 = vmatprep.subr.mxu0 0.0
    %444 = vmatpush1.xpose.msra.mxu0 %v413
    %445 = vmatprep.subr.mxu0 0.0
    %446 = vmatpush1.xpose.msra.mxu0 %v411
    %447 = vmatprep.subr.mxu0 0.0
    %448 = vmatpush2.xpose.msra.mxu0 0.0
    %449 = vmatprep.subr.mxu0 0.0
    %450 = vmatpush2.xpose.msra.mxu0 0.0
    %451 = vmatprep.subr.mxu0 0.0
    %452 = vmatpush2.xpose.msra.mxu0 0.0
    %453 = vmatprep.subr.mxu0 0.0
    %454 = vmatpush2.xpose.msra.mxu0 0.0
    %455 = vmatprep.subr.mxu0 0.0
    %456 = vmatpush2.xpose.msra.mxu0 0.0
    %457 = vmatprep.subr.mxu0 0.0
    %458 = vmatpush2.xpose.msra.mxu0 0.0
    %459 = vmatprep.subr.mxu0 0.0
    %460 = vmatpush2.xpose.msra.mxu0 0.0
    %461 = vmatprep.subr.mxu0 0.0
    %462 = vmatpush2.xpose.msra.mxu0 0.0
    %463 = vmatprep.subr.mxu0 0.0
    %464 = vmatpush2.xpose.msra.mxu0 0.0
    %465 = vmatprep.subr.mxu0 0.0
    %466 = vmatpush2.xpose.msra.mxu0 0.0
    %467 = vmatprep.subr.mxu0 0.0
    %468 = vmatpush2.xpose.msra.mxu0 0.0
    %469 = vmatprep.subr.mxu0 0.0
    %470 = vmatpush2.xpose.msra.mxu0 0.0
    %471 = vmatprep.subr.mxu0 0.0
    %472 = vmatpush2.xpose.msra.mxu0 0.0
    %473 = vmatprep.subr.mxu0 0.0
    %474 = vmatpush2.xpose.msra.mxu0 0.0
    %475 = vmatprep.subr.mxu0 0.0
    %476 = vmatpush2.xpose.msra.mxu0 0.0
    %477 = vmatprep.subr.mxu0 0.0
    %478 = vmatpush2.xpose.msra.mxu0 0.0
    %479 = vmatprep.mubr.f32.mxu0 0.0
    %480 = vmatmul.mubr.f32.gmra.mxu0 %v407
    %v481 = vpop.f32.mrf.mxu0
    %v482 = vadd.f32 0.0, %v481
    %v483 = vpop.f32.mrf.mxu0
    %484 = vmatprep.mubr.f32.mxu0 0.0
    %485 = vmatmul.mubr.f32.gmra.mxu0 %v409
    %v486 = vpop.f32.mrf.mxu0
    %v487 = vadd.f32 0.0, %v486
    %v488 = vpop.f32.mrf.mxu0
    %489 = vdwg.mxu0
    %v490 = vmul.f32 %v482, 0.25
    %v491 = vmul.f32 %v487, 0.25
    %v492 = vsel %vm278, %v490, -1e+30
    %v493 = vsel %vm279, %v491, -1e+30
    %v494 = vsel %vm188, %v492, -inf
    %495 = vmax.xlane.f32.xlu0 %v494
    %v496 = vpop.xlane.xlu0 %495
    %v497 = vsel %vm188, %v493, -inf
    %498 = vmax.xlane.f32.xlu0 %v497
    %v499 = vpop.xlane.xlu0 %498
    %v500 = vsub.f32 %v492, %v496
    %v501 = vsub.f32 %v493, %v499
    %v502 = vmul.f32 %v500, 1.442695
    %v503 = vpow.pop %v502
    %v504 = vmul.f32 %v501, 1.442695
    %v505 = vpow.pop %v504
    %v506 = vsel %vm188, %v503, 0.0
    %507 = vadd.xlane.f32.xlu0 %v506
    %v508 = vpop.xlane.xlu0 %507
    %v509 = vsel %vm188, %v505, 0.0
    %510 = vadd.xlane.f32.xlu0 %v509
    %v511 = vpop.xlane.xlu0 %510
    %v512 = vrcp.pop %v508
    %v513 = vrcp.pop %v511
    %v514 = vmul.f32 %v503, %v512
    %v515 = vmul.f32 %v505, %v513
    %516 = vrot.lane.b32.xlu0 %v172, 48
    %v517 = vpop.permute.xlu0 %516
    %518 = vrot.lane.b32.xlu0 %v178, 48
    %v519 = vpop.permute.xlu0 %518
    %v523 = vsel %vm188, %v514, 0
    %v526 = vsel %vm188, %v515, 0
    %528 = vmatprep.subr.mxu0 0.0
    %529 = vmatpush1.msra.mxu0 0.0
    %530 = vmatprep.subr.mxu0 0.0
    %531 = vmatpush1.msra.mxu0 0.0
    %532 = vmatprep.subr.mxu0 0.0
    %533 = vmatpush1.msra.mxu0 0.0
    %534 = vmatprep.subr.mxu0 0.0
    %535 = vmatpush1.msra.mxu0 0.0
    %536 = vmatprep.subr.mxu0 0.0
    %537 = vmatpush1.msra.mxu0 0.0
    %538 = vmatprep.subr.mxu0 0.0
    %539 = vmatpush1.msra.mxu0 0.0
    %540 = vmatprep.subr.mxu0 0.0
    %541 = vmatpush1.msra.mxu0 0.0
    %542 = vmatprep.subr.mxu0 0.0
    %543 = vmatpush1.msra.mxu0 0.0
    %544 = vmatprep.subr.mxu0 0.0
    %545 = vmatpush1.msra.mxu0 0.0
    %546 = vmatprep.subr.mxu0 0.0
    %547 = vmatpush1.msra.mxu0 0.0
    %548 = vmatprep.subr.mxu0 0.0
    %549 = vmatpush1.msra.mxu0 0.0
    %550 = vmatprep.subr.mxu0 0.0
    %551 = vmatpush1.msra.mxu0 0.0
    %552 = vmatprep.subr.mxu0 0.0
    %553 = vmatpush1.msra.mxu0 0.0
    %554 = vmatprep.subr.mxu0 0.0
    %555 = vmatpush1.msra.mxu0 0.0
    %556 = vmatprep.subr.mxu0 0.0
    %557 = vmatpush1.msra.mxu0 %v519
    %558 = vmatprep.subr.mxu0 0.0
    %559 = vmatpush1.msra.mxu0 %v517
    %560 = vmatprep.subr.mxu0 0.0
    %561 = vmatpush2.msra.mxu0 0.0
    %562 = vmatprep.subr.mxu0 0.0
    %563 = vmatpush2.msra.mxu0 0.0
    %564 = vmatprep.subr.mxu0 0.0
    %565 = vmatpush2.msra.mxu0 0.0
    %566 = vmatprep.subr.mxu0 0.0
    %567 = vmatpush2.msra.mxu0 0.0
    %568 = vmatprep.subr.mxu0 0.0
    %569 = vmatpush2.msra.mxu0 0.0
    %570 = vmatprep.subr.mxu0 0.0
    %571 = vmatpush2.msra.mxu0 0.0
    %572 = vmatprep.subr.mxu0 0.0
    %573 = vmatpush2.msra.mxu0 0.0
    %574 = vmatprep.subr.mxu0 0.0
    %575 = vmatpush2.msra.mxu0 0.0
    %576 = vmatprep.subr.mxu0 0.0
    %577 = vmatpush2.msra.mxu0 0.0
    %578 = vmatprep.subr.mxu0 0.0
    %579 = vmatpush2.msra.mxu0 0.0
    %580 = vmatprep.subr.mxu0 0.0
    %581 = vmatpush2.msra.mxu0 0.0
    %582 = vmatprep.subr.mxu0 0.0
    %583 = vmatpush2.msra.mxu0 0.0
    %584 = vmatprep.subr.mxu0 0.0
    %585 = vmatpush2.msra.mxu0 0.0
    %586 = vmatprep.subr.mxu0 0.0
    %587 = vmatpush2.msra.mxu0 0.0
    %588 = vmatprep.subr.mxu0 0.0
    %589 = vmatpush2.msra.mxu0 0.0
    %590 = vmatprep.subr.mxu0 0.0
    %591 = vmatpush2.msra.mxu0 0.0
    %592 = vmatprep.mubr.f32.mxu0 0.0
    %593 = vmatmul.mubr.f32.gmra.mxu0 %v523
    %v594 = vpop.f32.mrf.mxu0
    %v595 = vadd.f32 0.0, %v594
    %v596 = vpop.f32.mrf.mxu0
    %597 = vmatprep.mubr.f32.mxu0 0.0
    %598 = vmatmul.mubr.f32.gmra.mxu0 %v526
    %v599 = vpop.f32.mrf.mxu0
    %v600 = vadd.f32 0.0, %v599
    %v601 = vpop.f32.mrf.mxu0
    %602 = vdwg.mxu0
    %vm603 = vcmp.gt.f32.partialorder %v496, -1e+29
    %vm604 = vcmp.gt.f32.partialorder %v499, -1e+29
    %v605 = vsel %vm603, 1, 0
    %v606 = vsel %vm604, 1, 0
    %vm607 = vcmp.eq.s32.totalorder %v605, 1
    %vm608 = vcmp.eq.s32.totalorder %v606, 1
    %v609 = vsel %vm607, %v595, 0.0
    %v610 = vsel %vm608, %v600, 0.0
    %v611 = vadd.f32 %v397, %v609
    %v612 = vadd.f32 %v398, %v610
    %613 = vrot.lane.b32.xlu0 %v172, 32
    %v614 = vpop.permute.xlu0 %613
    %615 = vrot.lane.b32.xlu0 %v178, 32
    %v616 = vpop.permute.xlu0 %615
    %617 = vrot.lane.b32.xlu0 %v172, 16
    %v618 = vpop.permute.xlu0 %617
    %619 = vrot.lane.b32.xlu0 %v178, 16
    %v620 = vpop.permute.xlu0 %619
    %v621 = vsel %vm188, %v614, 0
    %v623 = vsel %vm188, %v616, 0
    %v625 = vsel %vm188, %v618, 0
    %v627 = vsel %vm188, %v620, 0
    %629 = vmatprep.subr.mxu0 0.0
    %630 = vmatpush1.xpose.msra.mxu0 0.0
    %631 = vmatprep.subr.mxu0 0.0
    %632 = vmatpush1.xpose.msra.mxu0 0.0
    %633 = vmatprep.subr.mxu0 0.0
    %634 = vmatpush1.xpose.msra.mxu0 0.0
    %635 = vmatprep.subr.mxu0 0.0
    %636 = vmatpush1.xpose.msra.mxu0 0.0
    %637 = vmatprep.subr.mxu0 0.0
    %638 = vmatpush1.xpose.msra.mxu0 0.0
    %639 = vmatprep.subr.mxu0 0.0
    %640 = vmatpush1.xpose.msra.mxu0 0.0
    %641 = vmatprep.subr.mxu0 0.0
    %642 = vmatpush1.xpose.msra.mxu0 0.0
    %643 = vmatprep.subr.mxu0 0.0
    %644 = vmatpush1.xpose.msra.mxu0 0.0
    %645 = vmatprep.subr.mxu0 0.0
    %646 = vmatpush1.xpose.msra.mxu0 0.0
    %647 = vmatprep.subr.mxu0 0.0
    %648 = vmatpush1.xpose.msra.mxu0 0.0
    %649 = vmatprep.subr.mxu0 0.0
    %650 = vmatpush1.xpose.msra.mxu0 0.0
    %651 = vmatprep.subr.mxu0 0.0
    %652 = vmatpush1.xpose.msra.mxu0 0.0
    %653 = vmatprep.subr.mxu0 0.0
    %654 = vmatpush1.xpose.msra.mxu0 0.0
    %655 = vmatprep.subr.mxu0 0.0
    %656 = vmatpush1.xpose.msra.mxu0 0.0
    %657 = vmatprep.subr.mxu0 0.0
    %658 = vmatpush1.xpose.msra.mxu0 %v627
    %659 = vmatprep.subr.mxu0 0.0
    %660 = vmatpush1.xpose.msra.mxu0 %v625
    %661 = vmatprep.subr.mxu0 0.0
    %662 = vmatpush2.xpose.msra.mxu0 0.0
    %663 = vmatprep.subr.mxu0 0.0
    %664 = vmatpush2.xpose.msra.mxu0 0.0
    %665 = vmatprep.subr.mxu0 0.0
    %666 = vmatpush2.xpose.msra.mxu0 0.0
    %667 = vmatprep.subr.mxu0 0.0
    %668 = vmatpush2.xpose.msra.mxu0 0.0
    %669 = vmatprep.subr.mxu0 0.0
    %670 = vmatpush2.xpose.msra.mxu0 0.0
    %671 = vmatprep.subr.mxu0 0.0
    %672 = vmatpush2.xpose.msra.mxu0 0.0
    %673 = vmatprep.subr.mxu0 0.0
    %674 = vmatpush2.xpose.msra.mxu0 0.0
    %675 = vmatprep.subr.mxu0 0.0
    %676 = vmatpush2.xpose.msra.mxu0 0.0
    %677 = vmatprep.subr.mxu0 0.0
    %678 = vmatpush2.xpose.msra.mxu0 0.0
    %679 = vmatprep.subr.mxu0 0.0
    %680 = vmatpush2.xpose.msra.mxu0 0.0
    %681 = vmatprep.subr.mxu0 0.0
    %682 = vmatpush2.xpose.msra.mxu0 0.0
    %683 = vmatprep.subr.mxu0 0.0
    %684 = vmatpush2.xpose.msra.mxu0 0.0
    %685 = vmatprep.subr.mxu0 0.0
    %686 = vmatpush2.xpose.msra.mxu0 0.0
    %687 = vmatprep.subr.mxu0 0.0
    %688 = vmatpush2.xpose.msra.mxu0 0.0
    %689 = vmatprep.subr.mxu0 0.0
    %690 = vmatpush2.xpose.msra.mxu0 0.0
    %691 = vmatprep.subr.mxu0 0.0
    %692 = vmatpush2.xpose.msra.mxu0 0.0
    %693 = vmatprep.mubr.f32.mxu0 0.0
    %694 = vmatmul.mubr.f32.gmra.mxu0 %v621
    %v695 = vpop.f32.mrf.mxu0
    %v696 = vadd.f32 0.0, %v695
    %v697 = vpop.f32.mrf.mxu0
    %698 = vmatprep.mubr.f32.mxu0 0.0
    %699 = vmatmul.mubr.f32.gmra.mxu0 %v623
    %v700 = vpop.f32.mrf.mxu0
    %v701 = vadd.f32 0.0, %v700
    %v702 = vpop.f32.mrf.mxu0
    %703 = vdwg.mxu0
    %v704 = vmul.f32 %v696, 0.25
    %v705 = vmul.f32 %v701, 0.25
    %v706 = vsel %vm278, %v704, -1e+30
    %v707 = vsel %vm279, %v705, -1e+30
    %v708 = vsel %vm188, %v706, -inf
    %709 = vmax.xlane.f32.xlu0 %v708
    %v710 = vpop.xlane.xlu0 %709
    %v711 = vsel %vm188, %v707, -inf
    %712 = vmax.xlane.f32.xlu0 %v711
    %v713 = vpop.xlane.xlu0 %712
    %v714 = vsub.f32 %v706, %v710
    %v715 = vsub.f32 %v707, %v713
    %v716 = vmul.f32 %v714, 1.442695
    %v717 = vpow.pop %v716
    %v718 = vmul.f32 %v715, 1.442695
    %v719 = vpow.pop %v718
    %v720 = vsel %vm188, %v717, 0.0
    %721 = vadd.xlane.f32.xlu0 %v720
    %v722 = vpop.xlane.xlu0 %721
    %v723 = vsel %vm188, %v719, 0.0
    %724 = vadd.xlane.f32.xlu0 %v723
    %v725 = vpop.xlane.xlu0 %724
    %v726 = vrcp.pop %v722
    %v727 = vrcp.pop %v725
    %v728 = vmul.f32 %v717, %v726
    %v729 = vmul.f32 %v719, %v727
    %v731 = vsel %vm188, %v728, 0
    %v734 = vsel %vm188, %v729, 0
    %736 = vmatprep.subr.mxu0 0.0
    %737 = vmatpush1.msra.mxu0 0.0
    %738 = vmatprep.subr.mxu0 0.0
    %739 = vmatpush1.msra.mxu0 0.0
    %740 = vmatprep.subr.mxu0 0.0
    %741 = vmatpush1.msra.mxu0 0.0
    %742 = vmatprep.subr.mxu0 0.0
    %743 = vmatpush1.msra.mxu0 0.0
    %744 = vmatprep.subr.mxu0 0.0
    %745 = vmatpush1.msra.mxu0 0.0
    %746 = vmatprep.subr.mxu0 0.0
    %747 = vmatpush1.msra.mxu0 0.0
    %748 = vmatprep.subr.mxu0 0.0
    %749 = vmatpush1.msra.mxu0 0.0
    %750 = vmatprep.subr.mxu0 0.0
    %751 = vmatpush1.msra.mxu0 0.0
    %752 = vmatprep.subr.mxu0 0.0
    %753 = vmatpush1.msra.mxu0 0.0
    %754 = vmatprep.subr.mxu0 0.0
    %755 = vmatpush1.msra.mxu0 0.0
    %756 = vmatprep.subr.mxu0 0.0
    %757 = vmatpush1.msra.mxu0 0.0
    %758 = vmatprep.subr.mxu0 0.0
    %759 = vmatpush1.msra.mxu0 0.0
    %760 = vmatprep.subr.mxu0 0.0
    %761 = vmatpush1.msra.mxu0 0.0
    %762 = vmatprep.subr.mxu0 0.0
    %763 = vmatpush1.msra.mxu0 0.0
    %764 = vmatprep.subr.mxu0 0.0
    %765 = vmatpush1.msra.mxu0 %v180
    %766 = vmatprep.subr.mxu0 0.0
    %767 = vmatpush1.msra.mxu0 %v174
    %768 = vmatprep.subr.mxu0 0.0
    %769 = vmatpush2.msra.mxu0 0.0
    %770 = vmatprep.subr.mxu0 0.0
    %771 = vmatpush2.msra.mxu0 0.0
    %772 = vmatprep.subr.mxu0 0.0
    %773 = vmatpush2.msra.mxu0 0.0
    %774 = vmatprep.subr.mxu0 0.0
    %775 = vmatpush2.msra.mxu0 0.0
    %776 = vmatprep.subr.mxu0 0.0
    %777 = vmatpush2.msra.mxu0 0.0
    %778 = vmatprep.subr.mxu0 0.0
    %779 = vmatpush2.msra.mxu0 0.0
    %780 = vmatprep.subr.mxu0 0.0
    %781 = vmatpush2.msra.mxu0 0.0
    %782 = vmatprep.subr.mxu0 0.0
    %783 = vmatpush2.msra.mxu0 0.0
    %784 = vmatprep.subr.mxu0 0.0
    %785 = vmatpush2.msra.mxu0 0.0
    %786 = vmatprep.subr.mxu0 0.0
    %787 = vmatpush2.msra.mxu0 0.0
    %788 = vmatprep.subr.mxu0 0.0
    %789 = vmatpush2.msra.mxu0 0.0
    %790 = vmatprep.subr.mxu0 0.0
    %791 = vmatpush2.msra.mxu0 0.0
    %792 = vmatprep.subr.mxu0 0.0
    %793 = vmatpush2.msra.mxu0 0.0
    %794 = vmatprep.subr.mxu0 0.0
    %795 = vmatpush2.msra.mxu0 0.0
    %796 = vmatprep.subr.mxu0 0.0
    %797 = vmatpush2.msra.mxu0 0.0
    %798 = vmatprep.subr.mxu0 0.0
    %799 = vmatpush2.msra.mxu0 0.0
    %800 = vmatprep.mubr.f32.mxu0 0.0
    %801 = vmatmul.mubr.f32.gmra.mxu0 %v731
    %v802 = vpop.f32.mrf.mxu0
    %v803 = vadd.f32 0.0, %v802
    %v804 = vpop.f32.mrf.mxu0
    %805 = vmatprep.mubr.f32.mxu0 0.0
    %806 = vmatmul.mubr.f32.gmra.mxu0 %v734
    %v807 = vpop.f32.mrf.mxu0
    %v808 = vadd.f32 0.0, %v807
    %v809 = vpop.f32.mrf.mxu0
    %810 = vdwg.mxu0
    %vm811 = vcmp.gt.f32.partialorder %v710, -1e+29
    %vm812 = vcmp.gt.f32.partialorder %v713, -1e+29
    %v813 = vsel %vm811, 1, 0
    %v814 = vsel %vm812, 1, 0
    %vm815 = vcmp.eq.s32.totalorder %v813, 1
    %vm816 = vcmp.eq.s32.totalorder %v814, 1
    %v817 = vsel %vm815, %v803, 0.0
    %v818 = vsel %vm816, %v808, 0.0
    %v819 = vadd.f32 %v611, %v817
    %v820 = vadd.f32 %v612, %v818
    %823 = vrot.lane.b32.xlu0 %v174, 112
    %v824 = vpop.permute.xlu0 %823
    %825 = vrot.lane.b32.xlu0 %v180, 112
    %v826 = vpop.permute.xlu0 %825
    %827 = vrot.lane.b32.xlu0 %v174, 96
    %v828 = vpop.permute.xlu0 %827
    %829 = vrot.lane.b32.xlu0 %v180, 96
    %v830 = vpop.permute.xlu0 %829
    %v831 = vsel %vm188, %v824, 0
    %v833 = vsel %vm188, %v826, 0
    %v835 = vsel %vm188, %v828, 0
    %v837 = vsel %vm188, %v830, 0
    %839 = vmatprep.subr.mxu0 0.0
    %840 = vmatpush1.xpose.msra.mxu0 0.0
    %841 = vmatprep.subr.mxu0 0.0
    %842 = vmatpush1.xpose.msra.mxu0 0.0
    %843 = vmatprep.subr.mxu0 0.0
    %844 = vmatpush1.xpose.msra.mxu0 0.0
    %845 = vmatprep.subr.mxu0 0.0
    %846 = vmatpush1.xpose.msra.mxu0 0.0
    %847 = vmatprep.subr.mxu0 0.0
    %848 = vmatpush1.xpose.msra.mxu0 0.0
    %849 = vmatprep.subr.mxu0 0.0
    %850 = vmatpush1.xpose.msra.mxu0 0.0
    %851 = vmatprep.subr.mxu0 0.0
    %852 = vmatpush1.xpose.msra.mxu0 0.0
    %853 = vmatprep.subr.mxu0 0.0
    %854 = vmatpush1.xpose.msra.mxu0 0.0
    %855 = vmatprep.subr.mxu0 0.0
    %856 = vmatpush1.xpose.msra.mxu0 0.0
    %857 = vmatprep.subr.mxu0 0.0
    %858 = vmatpush1.xpose.msra.mxu0 0.0
    %859 = vmatprep.subr.mxu0 0.0
    %860 = vmatpush1.xpose.msra.mxu0 0.0
    %861 = vmatprep.subr.mxu0 0.0
    %862 = vmatpush1.xpose.msra.mxu0 0.0
    %863 = vmatprep.subr.mxu0 0.0
    %864 = vmatpush1.xpose.msra.mxu0 0.0
    %865 = vmatprep.subr.mxu0 0.0
    %866 = vmatpush1.xpose.msra.mxu0 0.0
    %867 = vmatprep.subr.mxu0 0.0
    %868 = vmatpush1.xpose.msra.mxu0 %v837
    %869 = vmatprep.subr.mxu0 0.0
    %870 = vmatpush1.xpose.msra.mxu0 %v835
    %871 = vmatprep.subr.mxu0 0.0
    %872 = vmatpush2.xpose.msra.mxu0 0.0
    %873 = vmatprep.subr.mxu0 0.0
    %874 = vmatpush2.xpose.msra.mxu0 0.0
    %875 = vmatprep.subr.mxu0 0.0
    %876 = vmatpush2.xpose.msra.mxu0 0.0
    %877 = vmatprep.subr.mxu0 0.0
    %878 = vmatpush2.xpose.msra.mxu0 0.0
    %879 = vmatprep.subr.mxu0 0.0
    %880 = vmatpush2.xpose.msra.mxu0 0.0
    %881 = vmatprep.subr.mxu0 0.0
    %882 = vmatpush2.xpose.msra.mxu0 0.0
    %883 = vmatprep.subr.mxu0 0.0
    %884 = vmatpush2.xpose.msra.mxu0 0.0
    %885 = vmatprep.subr.mxu0 0.0
    %886 = vmatpush2.xpose.msra.mxu0 0.0
    %887 = vmatprep.subr.mxu0 0.0
    %888 = vmatpush2.xpose.msra.mxu0 0.0
    %889 = vmatprep.subr.mxu0 0.0
    %890 = vmatpush2.xpose.msra.mxu0 0.0
    %891 = vmatprep.subr.mxu0 0.0
    %892 = vmatpush2.xpose.msra.mxu0 0.0
    %893 = vmatprep.subr.mxu0 0.0
    %894 = vmatpush2.xpose.msra.mxu0 0.0
    %895 = vmatprep.subr.mxu0 0.0
    %896 = vmatpush2.xpose.msra.mxu0 0.0
    %897 = vmatprep.subr.mxu0 0.0
    %898 = vmatpush2.xpose.msra.mxu0 0.0
    %899 = vmatprep.subr.mxu0 0.0
    %900 = vmatpush2.xpose.msra.mxu0 0.0
    %901 = vmatprep.subr.mxu0 0.0
    %902 = vmatpush2.xpose.msra.mxu0 0.0
    %903 = vmatprep.mubr.f32.mxu0 0.0
    %904 = vmatmul.mubr.f32.gmra.mxu0 %v831
    %v905 = vpop.f32.mrf.mxu0
    %v906 = vadd.f32 0.0, %v905
    %v907 = vpop.f32.mrf.mxu0
    %908 = vmatprep.mubr.f32.mxu0 0.0
    %909 = vmatmul.mubr.f32.gmra.mxu0 %v833
    %v910 = vpop.f32.mrf.mxu0
    %v911 = vadd.f32 0.0, %v910
    %v912 = vpop.f32.mrf.mxu0
    %913 = vdwg.mxu0
    %v914 = vmul.f32 %v906, 0.25
    %v915 = vmul.f32 %v911, 0.25
    %v916 = vsel %vm278, %v914, -1e+30
    %v917 = vsel %vm279, %v915, -1e+30
    %v918 = vsel %vm188, %v916, -inf
    %919 = vmax.xlane.f32.xlu0 %v918
    %v920 = vpop.xlane.xlu0 %919
    %v921 = vsel %vm188, %v917, -inf
    %922 = vmax.xlane.f32.xlu0 %v921
    %v923 = vpop.xlane.xlu0 %922
    %v924 = vsub.f32 %v916, %v920
    %v925 = vsub.f32 %v917, %v923
    %v926 = vmul.f32 %v924, 1.442695
    %v927 = vpow.pop %v926
    %v928 = vmul.f32 %v925, 1.442695
    %v929 = vpow.pop %v928
    %v930 = vsel %vm188, %v927, 0.0
    %931 = vadd.xlane.f32.xlu0 %v930
    %v932 = vpop.xlane.xlu0 %931
    %v933 = vsel %vm188, %v929, 0.0
    %934 = vadd.xlane.f32.xlu0 %v933
    %v935 = vpop.xlane.xlu0 %934
    %v936 = vrcp.pop %v932
    %v937 = vrcp.pop %v935
    %v938 = vmul.f32 %v927, %v936
    %v939 = vmul.f32 %v929, %v937
    %940 = vrot.lane.b32.xlu0 %v174, 80
    %v941 = vpop.permute.xlu0 %940
    %942 = vrot.lane.b32.xlu0 %v180, 80
    %v943 = vpop.permute.xlu0 %942
    %v947 = vsel %vm188, %v938, 0
    %v950 = vsel %vm188, %v939, 0
    %952 = vmatprep.subr.mxu0 0.0
    %953 = vmatpush1.msra.mxu0 0.0
    %954 = vmatprep.subr.mxu0 0.0
    %955 = vmatpush1.msra.mxu0 0.0
    %956 = vmatprep.subr.mxu0 0.0
    %957 = vmatpush1.msra.mxu0 0.0
    %958 = vmatprep.subr.mxu0 0.0
    %959 = vmatpush1.msra.mxu0 0.0
    %960 = vmatprep.subr.mxu0 0.0
    %961 = vmatpush1.msra.mxu0 0.0
    %962 = vmatprep.subr.mxu0 0.0
    %963 = vmatpush1.msra.mxu0 0.0
    %964 = vmatprep.subr.mxu0 0.0
    %965 = vmatpush1.msra.mxu0 0.0
    %966 = vmatprep.subr.mxu0 0.0
    %967 = vmatpush1.msra.mxu0 0.0
    %968 = vmatprep.subr.mxu0 0.0
    %969 = vmatpush1.msra.mxu0 0.0
    %970 = vmatprep.subr.mxu0 0.0
    %971 = vmatpush1.msra.mxu0 0.0
    %972 = vmatprep.subr.mxu0 0.0
    %973 = vmatpush1.msra.mxu0 0.0
    %974 = vmatprep.subr.mxu0 0.0
    %975 = vmatpush1.msra.mxu0 0.0
    %976 = vmatprep.subr.mxu0 0.0
    %977 = vmatpush1.msra.mxu0 0.0
    %978 = vmatprep.subr.mxu0 0.0
    %979 = vmatpush1.msra.mxu0 0.0
    %980 = vmatprep.subr.mxu0 0.0
    %981 = vmatpush1.msra.mxu0 %v943
    %982 = vmatprep.subr.mxu0 0.0
    %983 = vmatpush1.msra.mxu0 %v941
    %984 = vmatprep.subr.mxu0 0.0
    %985 = vmatpush2.msra.mxu0 0.0
    %986 = vmatprep.subr.mxu0 0.0
    %987 = vmatpush2.msra.mxu0 0.0
    %988 = vmatprep.subr.mxu0 0.0
    %989 = vmatpush2.msra.mxu0 0.0
    %990 = vmatprep.subr.mxu0 0.0
    %991 = vmatpush2.msra.mxu0 0.0
    %992 = vmatprep.subr.mxu0 0.0
    %993 = vmatpush2.msra.mxu0 0.0
    %994 = vmatprep.subr.mxu0 0.0
    %995 = vmatpush2.msra.mxu0 0.0
    %996 = vmatprep.subr.mxu0 0.0
    %997 = vmatpush2.msra.mxu0 0.0
    %998 = vmatprep.subr.mxu0 0.0
    %999 = vmatpush2.msra.mxu0 0.0
    %1000 = vmatprep.subr.mxu0 0.0
    %1001 = vmatpush2.msra.mxu0 0.0
    %1002 = vmatprep.subr.mxu0 0.0
    %1003 = vmatpush2.msra.mxu0 0.0
    %1004 = vmatprep.subr.mxu0 0.0
    %1005 = vmatpush2.msra.mxu0 0.0
    %1006 = vmatprep.subr.mxu0 0.0
    %1007 = vmatpush2.msra.mxu0 0.0
    %1008 = vmatprep.subr.mxu0 0.0
    %1009 = vmatpush2.msra.mxu0 0.0
    %1010 = vmatprep.subr.mxu0 0.0
    %1011 = vmatpush2.msra.mxu0 0.0
    %1012 = vmatprep.subr.mxu0 0.0
    %1013 = vmatpush2.msra.mxu0 0.0
    %1014 = vmatprep.subr.mxu0 0.0
    %1015 = vmatpush2.msra.mxu0 0.0
    %1016 = vmatprep.mubr.f32.mxu0 0.0
    %1017 = vmatmul.mubr.f32.gmra.mxu0 %v947
    %v1018 = vpop.f32.mrf.mxu0
    %v1019 = vadd.f32 0.0, %v1018
    %v1020 = vpop.f32.mrf.mxu0
    %1021 = vmatprep.mubr.f32.mxu0 0.0
    %1022 = vmatmul.mubr.f32.gmra.mxu0 %v950
    %v1023 = vpop.f32.mrf.mxu0
    %v1024 = vadd.f32 0.0, %v1023
    %v1025 = vpop.f32.mrf.mxu0
    %1026 = vdwg.mxu0
    %vm1027 = vcmp.gt.f32.partialorder %v920, -1e+29
    %vm1028 = vcmp.gt.f32.partialorder %v923, -1e+29
    %v1029 = vsel %vm1027, 1, 0
    %v1030 = vsel %vm1028, 1, 0
    %vm1031 = vcmp.eq.s32.totalorder %v1029, 1
    %vm1032 = vcmp.eq.s32.totalorder %v1030, 1
    %v1033 = vsel %vm1031, %v1019, 0.0
    %v1034 = vsel %vm1032, %v1024, 0.0
    %v1035 = vadd.f32 %v819, %v1033
    %v1036 = vadd.f32 %v820, %v1034
    %v1037 = vmul.f32 %v1035, 0.25
    %v1038 = vmul.f32 %v1036, 0.25
    %1039 = vrot.lane.b32.xlu0 %v174, 64
    %v1040 = vpop.permute.xlu0 %1039
    %1041 = vrot.lane.b32.xlu0 %v180, 64
    %v1042 = vpop.permute.xlu0 %1041
    %v1045 = vadd.f32 %v1037, %v1040
    %v1046 = vadd.f32 %v1038, %v1042
    %v1047 = vmax.f32 %v1045, 0.0
    %v1048 = vmax.f32 %v1046, 0.0
    %v1049 = vld [vmem:[%s5] sm:$0xff]
    %v1050 = vld [vmem:[%s5 + $0x8] sm:$0xff]
    %v1051 = vld [vmem:[%s5 + $0x10] sm:$0xff]
    %v1052 = vld [vmem:[%s5 + $0x18] sm:$0xff]
    %v1053 = vld [vmem:[%s6] sm:$0x3]
    %v1055 = vlaneseq
    %v1056 = vshrl.u32 %v1055, 7
    %v1057 = vsub.s32 0, %v1056
    %v1058 = vrot.slane %v1053, %v1057
    %v1059 = vlaneseq
    %v1060 = vshrl.u32 %v1059, 7
    %v1061 = vsub.s32 1, %v1060
    %v1062 = vrot.slane %v1053, %v1061
    %v1066 = vsel %vm188, %v1047, 0
    %v1069 = vsel %vm188, %v1048, 0
    %1071 = vmatprep.subr.mxu0 0.0
    %1072 = vmatpush1.msra.mxu0 0.0
    %1073 = vmatprep.subr.mxu0 0.0
    %1074 = vmatpush1.msra.mxu0 0.0
    %1075 = vmatprep.subr.mxu0 0.0
    %1076 = vmatpush1.msra.mxu0 0.0
    %1077 = vmatprep.subr.mxu0 0.0
    %1078 = vmatpush1.msra.mxu0 0.0
    %1079 = vmatprep.subr.mxu0 0.0
    %1080 = vmatpush1.msra.mxu0 0.0
    %1081 = vmatprep.subr.mxu0 0.0
    %1082 = vmatpush1.msra.mxu0 0.0
    %1083 = vmatprep.subr.mxu0 0.0
    %1084 = vmatpush1.msra.mxu0 0.0
    %1085 = vmatprep.subr.mxu0 0.0
    %1086 = vmatpush1.msra.mxu0 0.0
    %1087 = vmatprep.subr.mxu0 0.0
    %1088 = vmatpush1.msra.mxu0 0.0
    %1089 = vmatprep.subr.mxu0 0.0
    %1090 = vmatpush1.msra.mxu0 0.0
    %1091 = vmatprep.subr.mxu0 0.0
    %1092 = vmatpush1.msra.mxu0 0.0
    %1093 = vmatprep.subr.mxu0 0.0
    %1094 = vmatpush1.msra.mxu0 0.0
    %1095 = vmatprep.subr.mxu0 0.0
    %1096 = vmatpush1.msra.mxu0 0.0
    %1097 = vmatprep.subr.mxu0 0.0
    %1098 = vmatpush1.msra.mxu0 0.0
    %1099 = vmatprep.subr.mxu0 %v1052
    %1100 = vmatpush1.msra.mxu0 %v1051
    %1101 = vmatprep.subr.mxu0 %v1050
    %1102 = vmatpush1.msra.mxu0 %v1049
    %1103 = vmatprep.subr.mxu0 0.0
    %1104 = vmatpush2.msra.mxu0 0.0
    %1105 = vmatprep.subr.mxu0 0.0
    %1106 = vmatpush2.msra.mxu0 0.0
    %1107 = vmatprep.subr.mxu0 0.0
    %1108 = vmatpush2.msra.mxu0 0.0
    %1109 = vmatprep.subr.mxu0 0.0
    %1110 = vmatpush2.msra.mxu0 0.0
    %1111 = vmatprep.subr.mxu0 0.0
    %1112 = vmatpush2.msra.mxu0 0.0
    %1113 = vmatprep.subr.mxu0 0.0
    %1114 = vmatpush2.msra.mxu0 0.0
    %1115 = vmatprep.subr.mxu0 0.0
    %1116 = vmatpush2.msra.mxu0 0.0
    %1117 = vmatprep.subr.mxu0 0.0
    %1118 = vmatpush2.msra.mxu0 0.0
    %1119 = vmatprep.subr.mxu0 0.0
    %1120 = vmatpush2.msra.mxu0 0.0
    %1121 = vmatprep.subr.mxu0 0.0
    %1122 = vmatpush2.msra.mxu0 0.0
    %1123 = vmatprep.subr.mxu0 0.0
    %1124 = vmatpush2.msra.mxu0 0.0
    %1125 = vmatprep.subr.mxu0 0.0
    %1126 = vmatpush2.msra.mxu0 0.0
    %1127 = vmatprep.subr.mxu0 0.0
    %1128 = vmatpush2.msra.mxu0 0.0
    %1129 = vmatprep.subr.mxu0 0.0
    %1130 = vmatpush2.msra.mxu0 0.0
    %1131 = vmatprep.subr.mxu0 0.0
    %1132 = vmatpush2.msra.mxu0 0.0
    %1133 = vmatprep.subr.mxu0 0.0
    %1134 = vmatpush2.msra.mxu0 0.0
    %1135 = vmatprep.mubr.f32.mxu0 0.0
    %1136 = vmatmul.mubr.f32.gmra.mxu0 %v1066
    %v1137 = vpop.f32.mrf.mxu0
    %v1138 = vadd.f32 %v1058, %v1137
    %v1139 = vpop.f32.mrf.mxu0
    %v1140 = vadd.f32 %v1062, %v1139
    %1141 = vmatprep.mubr.f32.mxu0 0.0
    %1142 = vmatmul.mubr.f32.gmra.mxu0 %v1069
    %v1143 = vpop.f32.mrf.mxu0
    %v1144 = vadd.f32 %v1058, %v1143
    %v1145 = vpop.f32.mrf.mxu0
    %v1146 = vadd.f32 %v1062, %v1145
    %1147 = vdwg.mxu0
    %1150 = vrot.lane.b32.xlu0 %v1138, 112
    %v1151 = vpop.permute.xlu0 %1150
    %1152 = vrot.lane.b32.xlu0 %v1144, 112
    %v1153 = vpop.permute.xlu0 %1152
    %v1154 = vsel %vm188, %v1138, 0
    %v1156 = vsel %vm188, %v1144, 0
    %v1158 = vsel %vm188, %v1151, 0
    %v1160 = vsel %vm188, %v1153, 0
    %1162 = vmatprep.subr.mxu0 0.0
    %1163 = vmatpush1.xpose.msra.mxu0 0.0
    %1164 = vmatprep.subr.mxu0 0.0
    %1165 = vmatpush1.xpose.msra.mxu0 0.0
    %1166 = vmatprep.subr.mxu0 0.0
    %1167 = vmatpush1.xpose.msra.mxu0 0.0
    %1168 = vmatprep.subr.mxu0 0.0
    %1169 = vmatpush1.xpose.msra.mxu0 0.0
    %1170 = vmatprep.subr.mxu0 0.0
    %1171 = vmatpush1.xpose.msra.mxu0 0.0
    %1172 = vmatprep.subr.mxu0 0.0
    %1173 = vmatpush1.xpose.msra.mxu0 0.0
    %1174 = vmatprep.subr.mxu0 0.0
    %1175 = vmatpush1.xpose.msra.mxu0 0.0
    %1176 = vmatprep.subr.mxu0 0.0
    %1177 = vmatpush1.xpose.msra.mxu0 0.0
    %1178 = vmatprep.subr.mxu0 0.0
    %1179 = vmatpush1.xpose.msra.mxu0 0.0
    %1180 = vmatprep.subr.mxu0 0.0
    %1181 = vmatpush1.xpose.msra.mxu0 0.0
    %1182 = vmatprep.subr.mxu0 0.0
    %1183 = vmatpush1.xpose.msra.mxu0 0.0
    %1184 = vmatprep.subr.mxu0 0.0
    %1185 = vmatpush1.xpose.msra.mxu0 0.0
    %1186 = vmatprep.subr.mxu0 0.0
    %1187 = vmatpush1.xpose.msra.mxu0 0.0
    %1188 = vmatprep.subr.mxu0 0.0
    %1189 = vmatpush1.xpose.msra.mxu0 0.0
    %1190 = vmatprep.subr.mxu0 0.0
    %1191 = vmatpush1.xpose.msra.mxu0 %v1160
    %1192 = vmatprep.subr.mxu0 0.0
    %1193 = vmatpush1.xpose.msra.mxu0 %v1158
    %1194 = vmatprep.subr.mxu0 0.0
    %1195 = vmatpush2.xpose.msra.mxu0 0.0
    %1196 = vmatprep.subr.mxu0 0.0
    %1197 = vmatpush2.xpose.msra.mxu0 0.0
    %1198 = vmatprep.subr.mxu0 0.0
    %1199 = vmatpush2.xpose.msra.mxu0 0.0
    %1200 = vmatprep.subr.mxu0 0.0
    %1201 = vmatpush2.xpose.msra.mxu0 0.0
    %1202 = vmatprep.subr.mxu0 0.0
    %1203 = vmatpush2.xpose.msra.mxu0 0.0
    %1204 = vmatprep.subr.mxu0 0.0
    %1205 = vmatpush2.xpose.msra.mxu0 0.0
    %1206 = vmatprep.subr.mxu0 0.0
    %1207 = vmatpush2.xpose.msra.mxu0 0.0
    %1208 = vmatprep.subr.mxu0 0.0
    %1209 = vmatpush2.xpose.msra.mxu0 0.0
    %1210 = vmatprep.subr.mxu0 0.0
    %1211 = vmatpush2.xpose.msra.mxu0 0.0
    %1212 = vmatprep.subr.mxu0 0.0
    %1213 = vmatpush2.xpose.msra.mxu0 0.0
    %1214 = vmatprep.subr.mxu0 0.0
    %1215 = vmatpush2.xpose.msra.mxu0 0.0
    %1216 = vmatprep.subr.mxu0 0.0
    %1217 = vmatpush2.xpose.msra.mxu0 0.0
    %1218 = vmatprep.subr.mxu0 0.0
    %1219 = vmatpush2.xpose.msra.mxu0 0.0
    %1220 = vmatprep.subr.mxu0 0.0
    %1221 = vmatpush2.xpose.msra.mxu0 0.0
    %1222 = vmatprep.subr.mxu0 0.0
    %1223 = vmatpush2.xpose.msra.mxu0 0.0
    %1224 = vmatprep.subr.mxu0 0.0
    %1225 = vmatpush2.xpose.msra.mxu0 0.0
    %1226 = vmatprep.mubr.f32.mxu0 0.0
    %1227 = vmatmul.mubr.f32.gmra.mxu0 %v1154
    %v1228 = vpop.f32.mrf.mxu0
    %v1229 = vadd.f32 0.0, %v1228
    %v1230 = vpop.f32.mrf.mxu0
    %1231 = vmatprep.mubr.f32.mxu0 0.0
    %1232 = vmatmul.mubr.f32.gmra.mxu0 %v1156
    %v1233 = vpop.f32.mrf.mxu0
    %v1234 = vadd.f32 0.0, %v1233
    %v1235 = vpop.f32.mrf.mxu0
    %1236 = vdwg.mxu0
    %v1237 = vmul.f32 %v1229, 0.25
    %v1238 = vmul.f32 %v1234, 0.25
    %v1239 = vsel %vm278, %v1237, -1e+30
    %v1240 = vsel %vm279, %v1238, -1e+30
    %v1241 = vsel %vm188, %v1239, -inf
    %1242 = vmax.xlane.f32.xlu0 %v1241
    %v1243 = vpop.xlane.xlu0 %1242
    %v1244 = vsel %vm188, %v1240, -inf
    %1245 = vmax.xlane.f32.xlu0 %v1244
    %v1246 = vpop.xlane.xlu0 %1245
    %v1247 = vsub.f32 %v1239, %v1243
    %v1248 = vsub.f32 %v1240, %v1246
    %v1249 = vmul.f32 %v1247, 1.442695
    %v1250 = vpow.pop %v1249
    %v1251 = vmul.f32 %v1248, 1.442695
    %v1252 = vpow.pop %v1251
    %v1253 = vsel %vm188, %v1250, 0.0
    %1254 = vadd.xlane.f32.xlu0 %v1253
    %v1255 = vpop.xlane.xlu0 %1254
    %v1256 = vsel %vm188, %v1252, 0.0
    %1257 = vadd.xlane.f32.xlu0 %v1256
    %v1258 = vpop.xlane.xlu0 %1257
    %v1259 = vrcp.pop %v1255
    %v1260 = vrcp.pop %v1258
    %v1261 = vmul.f32 %v1250, %v1259
    %v1262 = vmul.f32 %v1252, %v1260
    %1263 = vrot.lane.b32.xlu0 %v1138, 96
    %v1264 = vpop.permute.xlu0 %1263
    %1265 = vrot.lane.b32.xlu0 %v1144, 96
    %v1266 = vpop.permute.xlu0 %1265
    %v1270 = vsel %vm188, %v1261, 0
    %v1273 = vsel %vm188, %v1262, 0
    %1275 = vmatprep.subr.mxu0 0.0
    %1276 = vmatpush1.msra.mxu0 0.0
    %1277 = vmatprep.subr.mxu0 0.0
    %1278 = vmatpush1.msra.mxu0 0.0
    %1279 = vmatprep.subr.mxu0 0.0
    %1280 = vmatpush1.msra.mxu0 0.0
    %1281 = vmatprep.subr.mxu0 0.0
    %1282 = vmatpush1.msra.mxu0 0.0
    %1283 = vmatprep.subr.mxu0 0.0
    %1284 = vmatpush1.msra.mxu0 0.0
    %1285 = vmatprep.subr.mxu0 0.0
    %1286 = vmatpush1.msra.mxu0 0.0
    %1287 = vmatprep.subr.mxu0 0.0
    %1288 = vmatpush1.msra.mxu0 0.0
    %1289 = vmatprep.subr.mxu0 0.0
    %1290 = vmatpush1.msra.mxu0 0.0
    %1291 = vmatprep.subr.mxu0 0.0
    %1292 = vmatpush1.msra.mxu0 0.0
    %1293 = vmatprep.subr.mxu0 0.0
    %1294 = vmatpush1.msra.mxu0 0.0
    %1295 = vmatprep.subr.mxu0 0.0
    %1296 = vmatpush1.msra.mxu0 0.0
    %1297 = vmatprep.subr.mxu0 0.0
    %1298 = vmatpush1.msra.mxu0 0.0
    %1299 = vmatprep.subr.mxu0 0.0
    %1300 = vmatpush1.msra.mxu0 0.0
    %1301 = vmatprep.subr.mxu0 0.0
    %1302 = vmatpush1.msra.mxu0 0.0
    %1303 = vmatprep.subr.mxu0 0.0
    %1304 = vmatpush1.msra.mxu0 %v1266
    %1305 = vmatprep.subr.mxu0 0.0
    %1306 = vmatpush1.msra.mxu0 %v1264
    %1307 = vmatprep.subr.mxu0 0.0
    %1308 = vmatpush2.msra.mxu0 0.0
    %1309 = vmatprep.subr.mxu0 0.0
    %1310 = vmatpush2.msra.mxu0 0.0
    %1311 = vmatprep.subr.mxu0 0.0
    %1312 = vmatpush2.msra.mxu0 0.0
    %1313 = vmatprep.subr.mxu0 0.0
    %1314 = vmatpush2.msra.mxu0 0.0
    %1315 = vmatprep.subr.mxu0 0.0
    %1316 = vmatpush2.msra.mxu0 0.0
    %1317 = vmatprep.subr.mxu0 0.0
    %1318 = vmatpush2.msra.mxu0 0.0
    %1319 = vmatprep.subr.mxu0 0.0
    %1320 = vmatpush2.msra.mxu0 0.0
    %1321 = vmatprep.subr.mxu0 0.0
    %1322 = vmatpush2.msra.mxu0 0.0
    %1323 = vmatprep.subr.mxu0 0.0
    %1324 = vmatpush2.msra.mxu0 0.0
    %1325 = vmatprep.subr.mxu0 0.0
    %1326 = vmatpush2.msra.mxu0 0.0
    %1327 = vmatprep.subr.mxu0 0.0
    %1328 = vmatpush2.msra.mxu0 0.0
    %1329 = vmatprep.subr.mxu0 0.0
    %1330 = vmatpush2.msra.mxu0 0.0
    %1331 = vmatprep.subr.mxu0 0.0
    %1332 = vmatpush2.msra.mxu0 0.0
    %1333 = vmatprep.subr.mxu0 0.0
    %1334 = vmatpush2.msra.mxu0 0.0
    %1335 = vmatprep.subr.mxu0 0.0
    %1336 = vmatpush2.msra.mxu0 0.0
    %1337 = vmatprep.subr.mxu0 0.0
    %1338 = vmatpush2.msra.mxu0 0.0
    %1339 = vmatprep.mubr.f32.mxu0 0.0
    %1340 = vmatmul.mubr.f32.gmra.mxu0 %v1270
    %v1341 = vpop.f32.mrf.mxu0
    %v1342 = vadd.f32 0.0, %v1341
    %v1343 = vpop.f32.mrf.mxu0
    %1344 = vmatprep.mubr.f32.mxu0 0.0
    %1345 = vmatmul.mubr.f32.gmra.mxu0 %v1273
    %v1346 = vpop.f32.mrf.mxu0
    %v1347 = vadd.f32 0.0, %v1346
    %v1348 = vpop.f32.mrf.mxu0
    %1349 = vdwg.mxu0
    %vm1350 = vcmp.gt.f32.partialorder %v1243, -1e+29
    %vm1351 = vcmp.gt.f32.partialorder %v1246, -1e+29
    %v1352 = vsel %vm1350, 1, 0
    %v1353 = vsel %vm1351, 1, 0
    %vm1354 = vcmp.eq.s32.totalorder %v1352, 1
    %vm1355 = vcmp.eq.s32.totalorder %v1353, 1
    %v1356 = vsel %vm1354, %v1342, 0.0
    %v1357 = vsel %vm1355, %v1347, 0.0
    %1358 = vrot.lane.b32.xlu0 %v1138, 80
    %v1359 = vpop.permute.xlu0 %1358
    %1360 = vrot.lane.b32.xlu0 %v1144, 80
    %v1361 = vpop.permute.xlu0 %1360
    %1362 = vrot.lane.b32.xlu0 %v1138, 64
    %v1363 = vpop.permute.xlu0 %1362
    %1364 = vrot.lane.b32.xlu0 %v1144, 64
    %v1365 = vpop.permute.xlu0 %1364
    %v1366 = vsel %vm188, %v1359, 0
    %v1368 = vsel %vm188, %v1361, 0
    %v1370 = vsel %vm188, %v1363, 0
    %v1372 = vsel %vm188, %v1365, 0
    %1374 = vmatprep.subr.mxu0 0.0
    %1375 = vmatpush1.xpose.msra.mxu0 0.0
    %1376 = vmatprep.subr.mxu0 0.0
    %1377 = vmatpush1.xpose.msra.mxu0 0.0
    %1378 = vmatprep.subr.mxu0 0.0
    %1379 = vmatpush1.xpose.msra.mxu0 0.0
    %1380 = vmatprep.subr.mxu0 0.0
    %1381 = vmatpush1.xpose.msra.mxu0 0.0
    %1382 = vmatprep.subr.mxu0 0.0
    %1383 = vmatpush1.xpose.msra.mxu0 0.0
    %1384 = vmatprep.subr.mxu0 0.0
    %1385 = vmatpush1.xpose.msra.mxu0 0.0
    %1386 = vmatprep.subr.mxu0 0.0
    %1387 = vmatpush1.xpose.msra.mxu0 0.0
    %1388 = vmatprep.subr.mxu0 0.0
    %1389 = vmatpush1.xpose.msra.mxu0 0.0
    %1390 = vmatprep.subr.mxu0 0.0
    %1391 = vmatpush1.xpose.msra.mxu0 0.0
    %1392 = vmatprep.subr.mxu0 0.0
    %1393 = vmatpush1.xpose.msra.mxu0 0.0
    %1394 = vmatprep.subr.mxu0 0.0
    %1395 = vmatpush1.xpose.msra.mxu0 0.0
    %1396 = vmatprep.subr.mxu0 0.0
    %1397 = vmatpush1.xpose.msra.mxu0 0.0
    %1398 = vmatprep.subr.mxu0 0.0
    %1399 = vmatpush1.xpose.msra.mxu0 0.0
    %1400 = vmatprep.subr.mxu0 0.0
    %1401 = vmatpush1.xpose.msra.mxu0 0.0
    %1402 = vmatprep.subr.mxu0 0.0
    %1403 = vmatpush1.xpose.msra.mxu0 %v1372
    %1404 = vmatprep.subr.mxu0 0.0
    %1405 = vmatpush1.xpose.msra.mxu0 %v1370
    %1406 = vmatprep.subr.mxu0 0.0
    %1407 = vmatpush2.xpose.msra.mxu0 0.0
    %1408 = vmatprep.subr.mxu0 0.0
    %1409 = vmatpush2.xpose.msra.mxu0 0.0
    %1410 = vmatprep.subr.mxu0 0.0
    %1411 = vmatpush2.xpose.msra.mxu0 0.0
    %1412 = vmatprep.subr.mxu0 0.0
    %1413 = vmatpush2.xpose.msra.mxu0 0.0
    %1414 = vmatprep.subr.mxu0 0.0
    %1415 = vmatpush2.xpose.msra.mxu0 0.0
    %1416 = vmatprep.subr.mxu0 0.0
    %1417 = vmatpush2.xpose.msra.mxu0 0.0
    %1418 = vmatprep.subr.mxu0 0.0
    %1419 = vmatpush2.xpose.msra.mxu0 0.0
    %1420 = vmatprep.subr.mxu0 0.0
    %1421 = vmatpush2.xpose.msra.mxu0 0.0
    %1422 = vmatprep.subr.mxu0 0.0
    %1423 = vmatpush2.xpose.msra.mxu0 0.0
    %1424 = vmatprep.subr.mxu0 0.0
    %1425 = vmatpush2.xpose.msra.mxu0 0.0
    %1426 = vmatprep.subr.mxu0 0.0
    %1427 = vmatpush2.xpose.msra.mxu0 0.0
    %1428 = vmatprep.subr.mxu0 0.0
    %1429 = vmatpush2.xpose.msra.mxu0 0.0
    %1430 = vmatprep.subr.mxu0 0.0
    %1431 = vmatpush2.xpose.msra.mxu0 0.0
    %1432 = vmatprep.subr.mxu0 0.0
    %1433 = vmatpush2.xpose.msra.mxu0 0.0
    %1434 = vmatprep.subr.mxu0 0.0
    %1435 = vmatpush2.xpose.msra.mxu0 0.0
    %1436 = vmatprep.subr.mxu0 0.0
    %1437 = vmatpush2.xpose.msra.mxu0 0.0
    %1438 = vmatprep.mubr.f32.mxu0 0.0
    %1439 = vmatmul.mubr.f32.gmra.mxu0 %v1366
    %v1440 = vpop.f32.mrf.mxu0
    %v1441 = vadd.f32 0.0, %v1440
    %v1442 = vpop.f32.mrf.mxu0
    %1443 = vmatprep.mubr.f32.mxu0 0.0
    %1444 = vmatmul.mubr.f32.gmra.mxu0 %v1368
    %v1445 = vpop.f32.mrf.mxu0
    %v1446 = vadd.f32 0.0, %v1445
    %v1447 = vpop.f32.mrf.mxu0
    %1448 = vdwg.mxu0
    %v1449 = vmul.f32 %v1441, 0.25
    %v1450 = vmul.f32 %v1446, 0.25
    %v1451 = vsel %vm278, %v1449, -1e+30
    %v1452 = vsel %vm279, %v1450, -1e+30
    %v1453 = vsel %vm188, %v1451, -inf
    %1454 = vmax.xlane.f32.xlu0 %v1453
    %v1455 = vpop.xlane.xlu0 %1454
    %v1456 = vsel %vm188, %v1452, -inf
    %1457 = vmax.xlane.f32.xlu0 %v1456
    %v1458 = vpop.xlane.xlu0 %1457
    %v1459 = vsub.f32 %v1451, %v1455
    %v1460 = vsub.f32 %v1452, %v1458
    %v1461 = vmul.f32 %v1459, 1.442695
    %v1462 = vpow.pop %v1461
    %v1463 = vmul.f32 %v1460, 1.442695
    %v1464 = vpow.pop %v1463
    %v1465 = vsel %vm188, %v1462, 0.0
    %1466 = vadd.xlane.f32.xlu0 %v1465
    %v1467 = vpop.xlane.xlu0 %1466
    %v1468 = vsel %vm188, %v1464, 0.0
    %1469 = vadd.xlane.f32.xlu0 %v1468
    %v1470 = vpop.xlane.xlu0 %1469
    %v1471 = vrcp.pop %v1467
    %v1472 = vrcp.pop %v1470
    %v1473 = vmul.f32 %v1462, %v1471
    %v1474 = vmul.f32 %v1464, %v1472
    %1475 = vrot.lane.b32.xlu0 %v1138, 48
    %v1476 = vpop.permute.xlu0 %1475
    %1477 = vrot.lane.b32.xlu0 %v1144, 48
    %v1478 = vpop.permute.xlu0 %1477
    %v1482 = vsel %vm188, %v1473, 0
    %v1485 = vsel %vm188, %v1474, 0
    %1487 = vmatprep.subr.mxu0 0.0
    %1488 = vmatpush1.msra.mxu0 0.0
    %1489 = vmatprep.subr.mxu0 0.0
    %1490 = vmatpush1.msra.mxu0 0.0
    %1491 = vmatprep.subr.mxu0 0.0
    %1492 = vmatpush1.msra.mxu0 0.0
    %1493 = vmatprep.subr.mxu0 0.0
    %1494 = vmatpush1.msra.mxu0 0.0
    %1495 = vmatprep.subr.mxu0 0.0
    %1496 = vmatpush1.msra.mxu0 0.0
    %1497 = vmatprep.subr.mxu0 0.0
    %1498 = vmatpush1.msra.mxu0 0.0
    %1499 = vmatprep.subr.mxu0 0.0
    %1500 = vmatpush1.msra.mxu0 0.0
    %1501 = vmatprep.subr.mxu0 0.0
    %1502 = vmatpush1.msra.mxu0 0.0
    %1503 = vmatprep.subr.mxu0 0.0
    %1504 = vmatpush1.msra.mxu0 0.0
    %1505 = vmatprep.subr.mxu0 0.0
    %1506 = vmatpush1.msra.mxu0 0.0
    %1507 = vmatprep.subr.mxu0 0.0
    %1508 = vmatpush1.msra.mxu0 0.0
    %1509 = vmatprep.subr.mxu0 0.0
    %1510 = vmatpush1.msra.mxu0 0.0
    %1511 = vmatprep.subr.mxu0 0.0
    %1512 = vmatpush1.msra.mxu0 0.0
    %1513 = vmatprep.subr.mxu0 0.0
    %1514 = vmatpush1.msra.mxu0 0.0
    %1515 = vmatprep.subr.mxu0 0.0
    %1516 = vmatpush1.msra.mxu0 %v1478
    %1517 = vmatprep.subr.mxu0 0.0
    %1518 = vmatpush1.msra.mxu0 %v1476
    %1519 = vmatprep.subr.mxu0 0.0
    %1520 = vmatpush2.msra.mxu0 0.0
    %1521 = vmatprep.subr.mxu0 0.0
    %1522 = vmatpush2.msra.mxu0 0.0
    %1523 = vmatprep.subr.mxu0 0.0
    %1524 = vmatpush2.msra.mxu0 0.0
    %1525 = vmatprep.subr.mxu0 0.0
    %1526 = vmatpush2.msra.mxu0 0.0
    %1527 = vmatprep.subr.mxu0 0.0
    %1528 = vmatpush2.msra.mxu0 0.0
    %1529 = vmatprep.subr.mxu0 0.0
    %1530 = vmatpush2.msra.mxu0 0.0
    %1531 = vmatprep.subr.mxu0 0.0
    %1532 = vmatpush2.msra.mxu0 0.0
    %1533 = vmatprep.subr.mxu0 0.0
    %1534 = vmatpush2.msra.mxu0 0.0
    %1535 = vmatprep.subr.mxu0 0.0
    %1536 = vmatpush2.msra.mxu0 0.0
    %1537 = vmatprep.subr.mxu0 0.0
    %1538 = vmatpush2.msra.mxu0 0.0
    %1539 = vmatprep.subr.mxu0 0.0
    %1540 = vmatpush2.msra.mxu0 0.0
    %1541 = vmatprep.subr.mxu0 0.0
    %1542 = vmatpush2.msra.mxu0 0.0
    %1543 = vmatprep.subr.mxu0 0.0
    %1544 = vmatpush2.msra.mxu0 0.0
    %1545 = vmatprep.subr.mxu0 0.0
    %1546 = vmatpush2.msra.mxu0 0.0
    %1547 = vmatprep.subr.mxu0 0.0
    %1548 = vmatpush2.msra.mxu0 0.0
    %1549 = vmatprep.subr.mxu0 0.0
    %1550 = vmatpush2.msra.mxu0 0.0
    %1551 = vmatprep.mubr.f32.mxu0 0.0
    %1552 = vmatmul.mubr.f32.gmra.mxu0 %v1482
    %v1553 = vpop.f32.mrf.mxu0
    %v1554 = vadd.f32 0.0, %v1553
    %v1555 = vpop.f32.mrf.mxu0
    %1556 = vmatprep.mubr.f32.mxu0 0.0
    %1557 = vmatmul.mubr.f32.gmra.mxu0 %v1485
    %v1558 = vpop.f32.mrf.mxu0
    %v1559 = vadd.f32 0.0, %v1558
    %v1560 = vpop.f32.mrf.mxu0
    %1561 = vdwg.mxu0
    %vm1562 = vcmp.gt.f32.partialorder %v1455, -1e+29
    %vm1563 = vcmp.gt.f32.partialorder %v1458, -1e+29
    %v1564 = vsel %vm1562, 1, 0
    %v1565 = vsel %vm1563, 1, 0
    %vm1566 = vcmp.eq.s32.totalorder %v1564, 1
    %vm1567 = vcmp.eq.s32.totalorder %v1565, 1
    %v1568 = vsel %vm1566, %v1554, 0.0
    %v1569 = vsel %vm1567, %v1559, 0.0
    %v1570 = vadd.f32 %v1356, %v1568
    %v1571 = vadd.f32 %v1357, %v1569
    %1572 = vrot.lane.b32.xlu0 %v1138, 32
    %v1573 = vpop.permute.xlu0 %1572
    %1574 = vrot.lane.b32.xlu0 %v1144, 32
    %v1575 = vpop.permute.xlu0 %1574
    %1576 = vrot.lane.b32.xlu0 %v1138, 16
    %v1577 = vpop.permute.xlu0 %1576
    %1578 = vrot.lane.b32.xlu0 %v1144, 16
    %v1579 = vpop.permute.xlu0 %1578
    %v1580 = vsel %vm188, %v1573, 0
    %v1582 = vsel %vm188, %v1575, 0
    %v1584 = vsel %vm188, %v1577, 0
    %v1586 = vsel %vm188, %v1579, 0
    %1588 = vmatprep.subr.mxu0 0.0
    %1589 = vmatpush1.xpose.msra.mxu0 0.0
    %1590 = vmatprep.subr.mxu0 0.0
    %1591 = vmatpush1.xpose.msra.mxu0 0.0
    %1592 = vmatprep.subr.mxu0 0.0
    %1593 = vmatpush1.xpose.msra.mxu0 0.0
    %1594 = vmatprep.subr.mxu0 0.0
    %1595 = vmatpush1.xpose.msra.mxu0 0.0
    %1596 = vmatprep.subr.mxu0 0.0
    %1597 = vmatpush1.xpose.msra.mxu0 0.0
    %1598 = vmatprep.subr.mxu0 0.0
    %1599 = vmatpush1.xpose.msra.mxu0 0.0
    %1600 = vmatprep.subr.mxu0 0.0
    %1601 = vmatpush1.xpose.msra.mxu0 0.0
    %1602 = vmatprep.subr.mxu0 0.0
    %1603 = vmatpush1.xpose.msra.mxu0 0.0
    %1604 = vmatprep.subr.mxu0 0.0
    %1605 = vmatpush1.xpose.msra.mxu0 0.0
    %1606 = vmatprep.subr.mxu0 0.0
    %1607 = vmatpush1.xpose.msra.mxu0 0.0
    %1608 = vmatprep.subr.mxu0 0.0
    %1609 = vmatpush1.xpose.msra.mxu0 0.0
    %1610 = vmatprep.subr.mxu0 0.0
    %1611 = vmatpush1.xpose.msra.mxu0 0.0
    %1612 = vmatprep.subr.mxu0 0.0
    %1613 = vmatpush1.xpose.msra.mxu0 0.0
    %1614 = vmatprep.subr.mxu0 0.0
    %1615 = vmatpush1.xpose.msra.mxu0 0.0
    %1616 = vmatprep.subr.mxu0 0.0
    %1617 = vmatpush1.xpose.msra.mxu0 %v1586
    %1618 = vmatprep.subr.mxu0 0.0
    %1619 = vmatpush1.xpose.msra.mxu0 %v1584
    %1620 = vmatprep.subr.mxu0 0.0
    %1621 = vmatpush2.xpose.msra.mxu0 0.0
    %1622 = vmatprep.subr.mxu0 0.0
    %1623 = vmatpush2.xpose.msra.mxu0 0.0
    %1624 = vmatprep.subr.mxu0 0.0
    %1625 = vmatpush2.xpose.msra.mxu0 0.0
    %1626 = vmatprep.subr.mxu0 0.0
    %1627 = vmatpush2.xpose.msra.mxu0 0.0
    %1628 = vmatprep.subr.mxu0 0.0
    %1629 = vmatpush2.xpose.msra.mxu0 0.0
    %1630 = vmatprep.subr.mxu0 0.0
    %1631 = vmatpush2.xpose.msra.mxu0 0.0
    %1632 = vmatprep.subr.mxu0 0.0
    %1633 = vmatpush2.xpose.msra.mxu0 0.0
    %1634 = vmatprep.subr.mxu0 0.0
    %1635 = vmatpush2.xpose.msra.mxu0 0.0
    %1636 = vmatprep.subr.mxu0 0.0
    %1637 = vmatpush2.xpose.msra.mxu0 0.0
    %1638 = vmatprep.subr.mxu0 0.0
    %1639 = vmatpush2.xpose.msra.mxu0 0.0
    %1640 = vmatprep.subr.mxu0 0.0
    %1641 = vmatpush2.xpose.msra.mxu0 0.0
    %1642 = vmatprep.subr.mxu0 0.0
    %1643 = vmatpush2.xpose.msra.mxu0 0.0
    %1644 = vmatprep.subr.mxu0 0.0
    %1645 = vmatpush2.xpose.msra.mxu0 0.0
    %1646 = vmatprep.subr.mxu0 0.0
    %1647 = vmatpush2.xpose.msra.mxu0 0.0
    %1648 = vmatprep.subr.mxu0 0.0
    %1649 = vmatpush2.xpose.msra.mxu0 0.0
    %1650 = vmatprep.subr.mxu0 0.0
    %1651 = vmatpush2.xpose.msra.mxu0 0.0
    %1652 = vmatprep.mubr.f32.mxu0 0.0
    %1653 = vmatmul.mubr.f32.gmra.mxu0 %v1580
    %v1654 = vpop.f32.mrf.mxu0
    %v1655 = vadd.f32 0.0, %v1654
    %v1656 = vpop.f32.mrf.mxu0
    %1657 = vmatprep.mubr.f32.mxu0 0.0
    %1658 = vmatmul.mubr.f32.gmra.mxu0 %v1582
    %v1659 = vpop.f32.mrf.mxu0
    %v1660 = vadd.f32 0.0, %v1659
    %v1661 = vpop.f32.mrf.mxu0
    %1662 = vdwg.mxu0
    %v1663 = vmul.f32 %v1655, 0.25
    %v1664 = vmul.f32 %v1660, 0.25
    %v1665 = vsel %vm278, %v1663, -1e+30
    %v1666 = vsel %vm279, %v1664, -1e+30
    %v1667 = vsel %vm188, %v1665, -inf
    %1668 = vmax.xlane.f32.xlu0 %v1667
    %v1669 = vpop.xlane.xlu0 %1668
    %v1670 = vsel %vm188, %v1666, -inf
    %1671 = vmax.xlane.f32.xlu0 %v1670
    %v1672 = vpop.xlane.xlu0 %1671
    %v1673 = vsub.f32 %v1665, %v1669
    %v1674 = vsub.f32 %v1666, %v1672
    %v1675 = vmul.f32 %v1673, 1.442695
    %v1676 = vpow.pop %v1675
    %v1677 = vmul.f32 %v1674, 1.442695
    %v1678 = vpow.pop %v1677
    %v1679 = vsel %vm188, %v1676, 0.0
    %1680 = vadd.xlane.f32.xlu0 %v1679
    %v1681 = vpop.xlane.xlu0 %1680
    %v1682 = vsel %vm188, %v1678, 0.0
    %1683 = vadd.xlane.f32.xlu0 %v1682
    %v1684 = vpop.xlane.xlu0 %1683
    %v1685 = vrcp.pop %v1681
    %v1686 = vrcp.pop %v1684
    %v1687 = vmul.f32 %v1676, %v1685
    %v1688 = vmul.f32 %v1678, %v1686
    %v1690 = vsel %vm188, %v1687, 0
    %v1693 = vsel %vm188, %v1688, 0
    %1695 = vmatprep.subr.mxu0 0.0
    %1696 = vmatpush1.msra.mxu0 0.0
    %1697 = vmatprep.subr.mxu0 0.0
    %1698 = vmatpush1.msra.mxu0 0.0
    %1699 = vmatprep.subr.mxu0 0.0
    %1700 = vmatpush1.msra.mxu0 0.0
    %1701 = vmatprep.subr.mxu0 0.0
    %1702 = vmatpush1.msra.mxu0 0.0
    %1703 = vmatprep.subr.mxu0 0.0
    %1704 = vmatpush1.msra.mxu0 0.0
    %1705 = vmatprep.subr.mxu0 0.0
    %1706 = vmatpush1.msra.mxu0 0.0
    %1707 = vmatprep.subr.mxu0 0.0
    %1708 = vmatpush1.msra.mxu0 0.0
    %1709 = vmatprep.subr.mxu0 0.0
    %1710 = vmatpush1.msra.mxu0 0.0
    %1711 = vmatprep.subr.mxu0 0.0
    %1712 = vmatpush1.msra.mxu0 0.0
    %1713 = vmatprep.subr.mxu0 0.0
    %1714 = vmatpush1.msra.mxu0 0.0
    %1715 = vmatprep.subr.mxu0 0.0
    %1716 = vmatpush1.msra.mxu0 0.0
    %1717 = vmatprep.subr.mxu0 0.0
    %1718 = vmatpush1.msra.mxu0 0.0
    %1719 = vmatprep.subr.mxu0 0.0
    %1720 = vmatpush1.msra.mxu0 0.0
    %1721 = vmatprep.subr.mxu0 0.0
    %1722 = vmatpush1.msra.mxu0 0.0
    %1723 = vmatprep.subr.mxu0 0.0
    %1724 = vmatpush1.msra.mxu0 %v1146
    %1725 = vmatprep.subr.mxu0 0.0
    %1726 = vmatpush1.msra.mxu0 %v1140
    %1727 = vmatprep.subr.mxu0 0.0
    %1728 = vmatpush2.msra.mxu0 0.0
    %1729 = vmatprep.subr.mxu0 0.0
    %1730 = vmatpush2.msra.mxu0 0.0
    %1731 = vmatprep.subr.mxu0 0.0
    %1732 = vmatpush2.msra.mxu0 0.0
    %1733 = vmatprep.subr.mxu0 0.0
    %1734 = vmatpush2.msra.mxu0 0.0
    %1735 = vmatprep.subr.mxu0 0.0
    %1736 = vmatpush2.msra.mxu0 0.0
    %1737 = vmatprep.subr.mxu0 0.0
    %1738 = vmatpush2.msra.mxu0 0.0
    %1739 = vmatprep.subr.mxu0 0.0
    %1740 = vmatpush2.msra.mxu0 0.0
    %1741 = vmatprep.subr.mxu0 0.0
    %1742 = vmatpush2.msra.mxu0 0.0
    %1743 = vmatprep.subr.mxu0 0.0
    %1744 = vmatpush2.msra.mxu0 0.0
    %1745 = vmatprep.subr.mxu0 0.0
    %1746 = vmatpush2.msra.mxu0 0.0
    %1747 = vmatprep.subr.mxu0 0.0
    %1748 = vmatpush2.msra.mxu0 0.0
    %1749 = vmatprep.subr.mxu0 0.0
    %1750 = vmatpush2.msra.mxu0 0.0
    %1751 = vmatprep.subr.mxu0 0.0
    %1752 = vmatpush2.msra.mxu0 0.0
    %1753 = vmatprep.subr.mxu0 0.0
    %1754 = vmatpush2.msra.mxu0 0.0
    %1755 = vmatprep.subr.mxu0 0.0
    %1756 = vmatpush2.msra.mxu0 0.0
    %1757 = vmatprep.subr.mxu0 0.0
    %1758 = vmatpush2.msra.mxu0 0.0
    %1759 = vmatprep.mubr.f32.mxu0 0.0
    %1760 = vmatmul.mubr.f32.gmra.mxu0 %v1690
    %v1761 = vpop.f32.mrf.mxu0
    %v1762 = vadd.f32 0.0, %v1761
    %v1763 = vpop.f32.mrf.mxu0
    %1764 = vmatprep.mubr.f32.mxu0 0.0
    %1765 = vmatmul.mubr.f32.gmra.mxu0 %v1693
    %v1766 = vpop.f32.mrf.mxu0
    %v1767 = vadd.f32 0.0, %v1766
    %v1768 = vpop.f32.mrf.mxu0
    %1769 = vdwg.mxu0
    %vm1770 = vcmp.gt.f32.partialorder %v1669, -1e+29
    %vm1771 = vcmp.gt.f32.partialorder %v1672, -1e+29
    %v1772 = vsel %vm1770, 1, 0
    %v1773 = vsel %vm1771, 1, 0
    %vm1774 = vcmp.eq.s32.totalorder %v1772, 1
    %vm1775 = vcmp.eq.s32.totalorder %v1773, 1
    %v1776 = vsel %vm1774, %v1762, 0.0
    %v1777 = vsel %vm1775, %v1767, 0.0
    %v1778 = vadd.f32 %v1570, %v1776
    %v1779 = vadd.f32 %v1571, %v1777
    %1782 = vrot.lane.b32.xlu0 %v1140, 112
    %v1783 = vpop.permute.xlu0 %1782
    %1784 = vrot.lane.b32.xlu0 %v1146, 112
    %v1785 = vpop.permute.xlu0 %1784
    %1786 = vrot.lane.b32.xlu0 %v1140, 96
    %v1787 = vpop.permute.xlu0 %1786
    %1788 = vrot.lane.b32.xlu0 %v1146, 96
    %v1789 = vpop.permute.xlu0 %1788
    %v1790 = vsel %vm188, %v1783, 0
    %v1792 = vsel %vm188, %v1785, 0
    %v1794 = vsel %vm188, %v1787, 0
    %v1796 = vsel %vm188, %v1789, 0
    %1798 = vmatprep.subr.mxu0 0.0
    %1799 = vmatpush1.xpose.msra.mxu0 0.0
    %1800 = vmatprep.subr.mxu0 0.0
    %1801 = vmatpush1.xpose.msra.mxu0 0.0
    %1802 = vmatprep.subr.mxu0 0.0
    %1803 = vmatpush1.xpose.msra.mxu0 0.0
    %1804 = vmatprep.subr.mxu0 0.0
    %1805 = vmatpush1.xpose.msra.mxu0 0.0
    %1806 = vmatprep.subr.mxu0 0.0
    %1807 = vmatpush1.xpose.msra.mxu0 0.0
    %1808 = vmatprep.subr.mxu0 0.0
    %1809 = vmatpush1.xpose.msra.mxu0 0.0
    %1810 = vmatprep.subr.mxu0 0.0
    %1811 = vmatpush1.xpose.msra.mxu0 0.0
    %1812 = vmatprep.subr.mxu0 0.0
    %1813 = vmatpush1.xpose.msra.mxu0 0.0
    %1814 = vmatprep.subr.mxu0 0.0
    %1815 = vmatpush1.xpose.msra.mxu0 0.0
    %1816 = vmatprep.subr.mxu0 0.0
    %1817 = vmatpush1.xpose.msra.mxu0 0.0
    %1818 = vmatprep.subr.mxu0 0.0
    %1819 = vmatpush1.xpose.msra.mxu0 0.0
    %1820 = vmatprep.subr.mxu0 0.0
    %1821 = vmatpush1.xpose.msra.mxu0 0.0
    %1822 = vmatprep.subr.mxu0 0.0
    %1823 = vmatpush1.xpose.msra.mxu0 0.0
    %1824 = vmatprep.subr.mxu0 0.0
    %1825 = vmatpush1.xpose.msra.mxu0 0.0
    %1826 = vmatprep.subr.mxu0 0.0
    %1827 = vmatpush1.xpose.msra.mxu0 %v1796
    %1828 = vmatprep.subr.mxu0 0.0
    %1829 = vmatpush1.xpose.msra.mxu0 %v1794
    %1830 = vmatprep.subr.mxu0 0.0
    %1831 = vmatpush2.xpose.msra.mxu0 0.0
    %1832 = vmatprep.subr.mxu0 0.0
    %1833 = vmatpush2.xpose.msra.mxu0 0.0
    %1834 = vmatprep.subr.mxu0 0.0
    %1835 = vmatpush2.xpose.msra.mxu0 0.0
    %1836 = vmatprep.subr.mxu0 0.0
    %1837 = vmatpush2.xpose.msra.mxu0 0.0
    %1838 = vmatprep.subr.mxu0 0.0
    %1839 = vmatpush2.xpose.msra.mxu0 0.0
    %1840 = vmatprep.subr.mxu0 0.0
    %1841 = vmatpush2.xpose.msra.mxu0 0.0
    %1842 = vmatprep.subr.mxu0 0.0
    %1843 = vmatpush2.xpose.msra.mxu0 0.0
    %1844 = vmatprep.subr.mxu0 0.0
    %1845 = vmatpush2.xpose.msra.mxu0 0.0
    %1846 = vmatprep.subr.mxu0 0.0
    %1847 = vmatpush2.xpose.msra.mxu0 0.0
    %1848 = vmatprep.subr.mxu0 0.0
    %1849 = vmatpush2.xpose.msra.mxu0 0.0
    %1850 = vmatprep.subr.mxu0 0.0
    %1851 = vmatpush2.xpose.msra.mxu0 0.0
    %1852 = vmatprep.subr.mxu0 0.0
    %1853 = vmatpush2.xpose.msra.mxu0 0.0
    %1854 = vmatprep.subr.mxu0 0.0
    %1855 = vmatpush2.xpose.msra.mxu0 0.0
    %1856 = vmatprep.subr.mxu0 0.0
    %1857 = vmatpush2.xpose.msra.mxu0 0.0
    %1858 = vmatprep.subr.mxu0 0.0
    %1859 = vmatpush2.xpose.msra.mxu0 0.0
    %1860 = vmatprep.subr.mxu0 0.0
    %1861 = vmatpush2.xpose.msra.mxu0 0.0
    %1862 = vmatprep.mubr.f32.mxu0 0.0
    %1863 = vmatmul.mubr.f32.gmra.mxu0 %v1790
    %v1864 = vpop.f32.mrf.mxu0
    %v1865 = vadd.f32 0.0, %v1864
    %v1866 = vpop.f32.mrf.mxu0
    %1867 = vmatprep.mubr.f32.mxu0 0.0
    %1868 = vmatmul.mubr.f32.gmra.mxu0 %v1792
    %v1869 = vpop.f32.mrf.mxu0
    %v1870 = vadd.f32 0.0, %v1869
    %v1871 = vpop.f32.mrf.mxu0
    %1872 = vdwg.mxu0
    %v1873 = vmul.f32 %v1865, 0.25
    %v1874 = vmul.f32 %v1870, 0.25
    %v1875 = vsel %vm278, %v1873, -1e+30
    %v1876 = vsel %vm279, %v1874, -1e+30
    %v1877 = vsel %vm188, %v1875, -inf
    %1878 = vmax.xlane.f32.xlu0 %v1877
    %v1879 = vpop.xlane.xlu0 %1878
    %v1880 = vsel %vm188, %v1876, -inf
    %1881 = vmax.xlane.f32.xlu0 %v1880
    %v1882 = vpop.xlane.xlu0 %1881
    %v1883 = vsub.f32 %v1875, %v1879
    %v1884 = vsub.f32 %v1876, %v1882
    %v1885 = vmul.f32 %v1883, 1.442695
    %v1886 = vpow.pop %v1885
    %v1887 = vmul.f32 %v1884, 1.442695
    %v1888 = vpow.pop %v1887
    %v1889 = vsel %vm188, %v1886, 0.0
    %1890 = vadd.xlane.f32.xlu0 %v1889
    %v1891 = vpop.xlane.xlu0 %1890
    %v1892 = vsel %vm188, %v1888, 0.0
    %1893 = vadd.xlane.f32.xlu0 %v1892
    %v1894 = vpop.xlane.xlu0 %1893
    %v1895 = vrcp.pop %v1891
    %v1896 = vrcp.pop %v1894
    %v1897 = vmul.f32 %v1886, %v1895
    %v1898 = vmul.f32 %v1888, %v1896
    %1899 = vrot.lane.b32.xlu0 %v1140, 80
    %v1900 = vpop.permute.xlu0 %1899
    %1901 = vrot.lane.b32.xlu0 %v1146, 80
    %v1902 = vpop.permute.xlu0 %1901
    %v1906 = vsel %vm188, %v1897, 0
    %v1909 = vsel %vm188, %v1898, 0
    %1911 = vmatprep.subr.mxu0 0.0
    %1912 = vmatpush1.msra.mxu0 0.0
    %1913 = vmatprep.subr.mxu0 0.0
    %1914 = vmatpush1.msra.mxu0 0.0
    %1915 = vmatprep.subr.mxu0 0.0
    %1916 = vmatpush1.msra.mxu0 0.0
    %1917 = vmatprep.subr.mxu0 0.0
    %1918 = vmatpush1.msra.mxu0 0.0
    %1919 = vmatprep.subr.mxu0 0.0
    %1920 = vmatpush1.msra.mxu0 0.0
    %1921 = vmatprep.subr.mxu0 0.0
    %1922 = vmatpush1.msra.mxu0 0.0
    %1923 = vmatprep.subr.mxu0 0.0
    %1924 = vmatpush1.msra.mxu0 0.0
    %1925 = vmatprep.subr.mxu0 0.0
    %1926 = vmatpush1.msra.mxu0 0.0
    %1927 = vmatprep.subr.mxu0 0.0
    %1928 = vmatpush1.msra.mxu0 0.0
    %1929 = vmatprep.subr.mxu0 0.0
    %1930 = vmatpush1.msra.mxu0 0.0
    %1931 = vmatprep.subr.mxu0 0.0
    %1932 = vmatpush1.msra.mxu0 0.0
    %1933 = vmatprep.subr.mxu0 0.0
    %1934 = vmatpush1.msra.mxu0 0.0
    %1935 = vmatprep.subr.mxu0 0.0
    %1936 = vmatpush1.msra.mxu0 0.0
    %1937 = vmatprep.subr.mxu0 0.0
    %1938 = vmatpush1.msra.mxu0 0.0
    %1939 = vmatprep.subr.mxu0 0.0
    %1940 = vmatpush1.msra.mxu0 %v1902
    %1941 = vmatprep.subr.mxu0 0.0
    %1942 = vmatpush1.msra.mxu0 %v1900
    %1943 = vmatprep.subr.mxu0 0.0
    %1944 = vmatpush2.msra.mxu0 0.0
    %1945 = vmatprep.subr.mxu0 0.0
    %1946 = vmatpush2.msra.mxu0 0.0
    %1947 = vmatprep.subr.mxu0 0.0
    %1948 = vmatpush2.msra.mxu0 0.0
    %1949 = vmatprep.subr.mxu0 0.0
    %1950 = vmatpush2.msra.mxu0 0.0
    %1951 = vmatprep.subr.mxu0 0.0
    %1952 = vmatpush2.msra.mxu0 0.0
    %1953 = vmatprep.subr.mxu0 0.0
    %1954 = vmatpush2.msra.mxu0 0.0
    %1955 = vmatprep.subr.mxu0 0.0
    %1956 = vmatpush2.msra.mxu0 0.0
    %1957 = vmatprep.subr.mxu0 0.0
    %1958 = vmatpush2.msra.mxu0 0.0
    %1959 = vmatprep.subr.mxu0 0.0
    %1960 = vmatpush2.msra.mxu0 0.0
    %1961 = vmatprep.subr.mxu0 0.0
    %1962 = vmatpush2.msra.mxu0 0.0
    %1963 = vmatprep.subr.mxu0 0.0
    %1964 = vmatpush2.msra.mxu0 0.0
    %1965 = vmatprep.subr.mxu0 0.0
    %1966 = vmatpush2.msra.mxu0 0.0
    %1967 = vmatprep.subr.mxu0 0.0
    %1968 = vmatpush2.msra.mxu0 0.0
    %1969 = vmatprep.subr.mxu0 0.0
    %1970 = vmatpush2.msra.mxu0 0.0
    %1971 = vmatprep.subr.mxu0 0.0
    %1972 = vmatpush2.msra.mxu0 0.0
    %1973 = vmatprep.subr.mxu0 0.0
    %1974 = vmatpush2.msra.mxu0 0.0
    %1975 = vmatprep.mubr.f32.mxu0 0.0
    %1976 = vmatmul.mubr.f32.gmra.mxu0 %v1906
    %v1977 = vpop.f32.mrf.mxu0
    %v1978 = vadd.f32 0.0, %v1977
    %v1979 = vpop.f32.mrf.mxu0
    %1980 = vmatprep.mubr.f32.mxu0 0.0
    %1981 = vmatmul.mubr.f32.gmra.mxu0 %v1909
    %v1982 = vpop.f32.mrf.mxu0
    %v1983 = vadd.f32 0.0, %v1982
    %v1984 = vpop.f32.mrf.mxu0
    %1985 = vdwg.mxu0
    %vm1986 = vcmp.gt.f32.partialorder %v1879, -1e+29
    %vm1987 = vcmp.gt.f32.partialorder %v1882, -1e+29
    %v1988 = vsel %vm1986, 1, 0
    %v1989 = vsel %vm1987, 1, 0
    %vm1990 = vcmp.eq.s32.totalorder %v1988, 1
    %vm1991 = vcmp.eq.s32.totalorder %v1989, 1
    %v1992 = vsel %vm1990, %v1978, 0.0
    %v1993 = vsel %vm1991, %v1983, 0.0
    %v1994 = vadd.f32 %v1778, %v1992
    %v1995 = vadd.f32 %v1779, %v1993
    %v1996 = vmul.f32 %v1994, 0.25
    %v1997 = vmul.f32 %v1995, 0.25
    %1998 = vrot.lane.b32.xlu0 %v1140, 64
    %v1999 = vpop.permute.xlu0 %1998
    %2000 = vrot.lane.b32.xlu0 %v1146, 64
    %v2001 = vpop.permute.xlu0 %2000
    %v2004 = vadd.f32 %v1996, %v1999
    %v2005 = vadd.f32 %v1997, %v2001
    %v2006 = vld [vmem:[#allocation5] sm:$0x3]
    %v2008 = vsel %vm188, %v2006, 0
    %2010 = vmatprep.subr.mxu0 0.0
    %2011 = vmatpush1.msra.mxu0 0.0
    %2012 = vmatprep.subr.mxu0 0.0
    %2013 = vmatpush1.msra.mxu0 0.0
    %2014 = vmatprep.subr.mxu0 0.0
    %2015 = vmatpush1.msra.mxu0 0.0
    %2016 = vmatprep.subr.mxu0 0.0
    %2017 = vmatpush1.msra.mxu0 0.0
    %2018 = vmatprep.subr.mxu0 0.0
    %2019 = vmatpush1.msra.mxu0 0.0
    %2020 = vmatprep.subr.mxu0 0.0
    %2021 = vmatpush1.msra.mxu0 0.0
    %2022 = vmatprep.subr.mxu0 0.0
    %2023 = vmatpush1.msra.mxu0 0.0
    %2024 = vmatprep.subr.mxu0 0.0
    %2025 = vmatpush1.msra.mxu0 0.0
    %2026 = vmatprep.subr.mxu0 0.0
    %2027 = vmatpush1.msra.mxu0 0.0
    %2028 = vmatprep.subr.mxu0 0.0
    %2029 = vmatpush1.msra.mxu0 0.0
    %2030 = vmatprep.subr.mxu0 0.0
    %2031 = vmatpush1.msra.mxu0 0.0
    %2032 = vmatprep.subr.mxu0 0.0
    %2033 = vmatpush1.msra.mxu0 0.0
    %2034 = vmatprep.subr.mxu0 0.0
    %2035 = vmatpush1.msra.mxu0 0.0
    %2036 = vmatprep.subr.mxu0 0.0
    %2037 = vmatpush1.msra.mxu0 0.0
    %2038 = vmatprep.subr.mxu0 0.0
    %2039 = vmatpush1.msra.mxu0 %v2005
    %2040 = vmatprep.subr.mxu0 0.0
    %2041 = vmatpush1.msra.mxu0 %v2004
    %2042 = vmatprep.subr.mxu0 0.0
    %2043 = vmatpush2.msra.mxu0 0.0
    %2044 = vmatprep.subr.mxu0 0.0
    %2045 = vmatpush2.msra.mxu0 0.0
    %2046 = vmatprep.subr.mxu0 0.0
    %2047 = vmatpush2.msra.mxu0 0.0
    %2048 = vmatprep.subr.mxu0 0.0
    %2049 = vmatpush2.msra.mxu0 0.0
    %2050 = vmatprep.subr.mxu0 0.0
    %2051 = vmatpush2.msra.mxu0 0.0
    %2052 = vmatprep.subr.mxu0 0.0
    %2053 = vmatpush2.msra.mxu0 0.0
    %2054 = vmatprep.subr.mxu0 0.0
    %2055 = vmatpush2.msra.mxu0 0.0
    %2056 = vmatprep.subr.mxu0 0.0
    %2057 = vmatpush2.msra.mxu0 0.0
    %2058 = vmatprep.subr.mxu0 0.0
    %2059 = vmatpush2.msra.mxu0 0.0
    %2060 = vmatprep.subr.mxu0 0.0
    %2061 = vmatpush2.msra.mxu0 0.0
    %2062 = vmatprep.subr.mxu0 0.0
    %2063 = vmatpush2.msra.mxu0 0.0
    %2064 = vmatprep.subr.mxu0 0.0
    %2065 = vmatpush2.msra.mxu0 0.0
    %2066 = vmatprep.subr.mxu0 0.0
    %2067 = vmatpush2.msra.mxu0 0.0
    %2068 = vmatprep.subr.mxu0 0.0
    %2069 = vmatpush2.msra.mxu0 0.0
    %2070 = vmatprep.subr.mxu0 0.0
    %2071 = vmatpush2.msra.mxu0 0.0
    %2072 = vmatprep.subr.mxu0 0.0
    %2073 = vmatpush2.msra.mxu0 0.0
    %2074 = vmatprep.mubr.f32.mxu0 0.0
    %2075 = vmatmul.mubr.f32.gmra.mxu0 %v2008
    %v2076 = vpop.f32.mrf.mxu0
    %v2077 = vadd.f32 0.0, %v2076
    %v2078 = vpop.f32.mrf.mxu0
    %2079 = vdwg.mxu0
    %vm2080 = vcmask 123904
    %2081 = vst.msk [vmem:[#allocation10] sm:$0x3] %vm2080, %v2077
    // Predicated region
    $region46: #{tpu_custom_call.1} parent=1 // pred_check
      _
    $region47: #{tpu_custom_call.1} parent=1 // pred_check_branch
      %2083 = sbr.rel (0) target = $region49
    $region48: #{tpu_custom_call.1} parent=1 // pred_region
      %s2085 = ssub.s32 32, 32
      %2086 = vsyncadd [#allocation4], %s2085
      %s2088 = sshll.u32 [#allocation10], 4
      %s2089 = int_to_ptr.vmem [resolvable:$true] %s2088
      %2091 = dma.vmem_to_hbm [thread:$0]  %s2089, 32, %s7, [#allocation4]
    $region49: #{tpu_custom_call.1} parent=1 // pred_fallthru
      _
    // Predicated region
    $region50: #{tpu_custom_call.1} parent=1 // pred_check
      _
    $region51: #{tpu_custom_call.1} parent=1 // pred_check_branch
      %2093 = sbr.rel (0) target = $region53
    $region52: #{tpu_custom_call.1} parent=1 // pred_region
      %2094 = dma.done [#allocation4], 32
    $region53: #{tpu_custom_call.1} parent=1 // pred_fallthru
      _
    %2095 = vsyncpa [#allocation3], 1
    %2096 = vsyncpa [#allocation6], 1
    %2097 = vsyncpa [#allocation9], 1
    %2098 = vsyncpa [#allocation4], 1

</llo_original>
